<compile_context>
chip_gen: v7x
topology: tpu7x:2x2x1
jax: 0.10.0
libtpu: 0.0.40
codegen_flags: <defaults>
</compile_context>

<pallas_src>
import functools

import jax
import jax.numpy as jnp
from jax.experimental import pallas as pl
from jax.experimental.pallas import tpu as pltpu


def _round_up(x, m):
    return (x + m - 1) // m * m


def film_kernel(x_ref, emb_ref, gamma_ref, beta_ref,
                w1_ref, b1_ref, w2_ref, b2_ref, wh_ref, bh_ref,
                out_ref, *, h_valid, h_is_padded):
    d = pl.program_id(1)

    x = x_ref[...]                                   # (TN, Hp) f32, resident across d
    e = emb_ref[pl.ds(d, 1), :]                      # (1, Hp) row of resident emb table
    h = x + e

    # LayerNorm over hidden dim, eps=1e-6, explicit 1/H divisor so lane padding
    # (padded x/emb lanes are zero) never pollutes the statistics.
    inv_h = 1.0 / float(h_valid)
    mean = jnp.sum(h, axis=-1, keepdims=True) * inv_h
    centered = h - mean
    if h_is_padded:
        lane = jax.lax.broadcasted_iota(jnp.int32, h.shape, dimension=1)
        centered = jnp.where(lane < h_valid, centered, 0.0)
    var = jnp.sum(centered * centered, axis=-1, keepdims=True) * inv_h
    inv = jax.lax.rsqrt(var + 1e-6)
    hn = centered * inv * gamma_ref[...] + beta_ref[...]   # padded lanes -> 0

    def mm(a, w_ref_):
        w = w_ref_[...]                              # already in its storage dtype
        return jnp.dot(a.astype(w.dtype), w, preferred_element_type=jnp.float32)

    # MLP trunk: Linear -> ReLU -> Linear -> ReLU (f32 elementwise path).
    h1 = jnp.maximum(mm(hn, w1_ref) + b1_ref[...], 0.0)
    h2 = jnp.maximum(mm(h1, w2_ref) + b2_ref[...], 0.0)

    # Fused [scale | bias] head -> single lane-dense (TN, C2p) store.
    out_ref[...] = mm(h2, wh_ref) + bh_ref[...]


def _choose_token_tile(n_tokens, per_row_bytes, act_budget_bytes):
    """MXU-aligned token tile sized from the VMEM budget, >=2 tiles when possible."""
    if n_tokens <= 256:
        return _round_up(max(n_tokens, 8), 8)        # single small tile
    align = 256 if n_tokens >= 512 else 128          # MXU M-dim alignment
    t = int(act_budget_bytes // max(per_row_bytes, 1))
    t = max(align, min(t, 2048))
    t = (t // align) * align
    half = (((n_tokens + 1) // 2) // align) * align  # >=2 tiles -> both v7x TCs busy
    if half >= align:
        t = min(t, half)
    return max(align, t)


def film_generator_forward(x, params, *, token_tile=None, use_bf16=False):
    """x: (B, T, hidden) f32  ->  (scales, biases), each (depth, B, T, channel)."""
    B, T, H = x.shape
    N = B * T
    depth = params["emb"].shape[0]
    HH = params["w1"].shape[1]          # hidden // 2
    C = params["ws"].shape[1]

    f32 = jnp.float32
    wdt = jnp.bfloat16 if use_bf16 else jnp.float32   # MXU operand dtype (pre-cast)

    # ---- lane-pad dims to multiples of 128 (zero pad, exact numerics) ----
    Hp = _round_up(H, 128)
    HHp = _round_up(HH, 128)
    C2 = 2 * C
    C2p = _round_up(C2, 128)

    emb_p = jnp.zeros((depth, Hp), f32).at[:, :H].set(params["emb"].astype(f32))
    gamma = jnp.zeros((1, Hp), f32).at[:, :H].set(params["gamma"].astype(f32))
    beta = jnp.zeros((1, Hp), f32).at[:, :H].set(params["beta"].astype(f32))

    w1 = jnp.zeros((Hp, HHp), f32).at[:H, :HH].set(params["w1"]).astype(wdt)
    b1 = jnp.zeros((1, HHp), f32).at[:, :HH].set(params["b1"])
    w2 = jnp.zeros((HHp, HHp), f32).at[:HH, :HH].set(params["w2"]).astype(wdt)
    b2 = jnp.zeros((1, HHp), f32).at[:, :HH].set(params["b2"])
    wh = (jnp.zeros((HHp, C2p), f32)
          .at[:HH, :C].set(params["ws"])
          .at[:HH, C:C2].set(params["wb"])).astype(wdt)
    bh = (jnp.zeros((1, C2p), f32)
          .at[:, :C].set(params["bs"])
          .at[:, C:C2].set(params["bb"]))

    # ---- per-generation VMEM budget ----
    try:
        vmem_cap = int(pltpu.get_tpu_info().vmem_capacity_bytes)
    except Exception:
        vmem_cap = 64 << 20                           # conservative (v7x) fallback
    vmem_budget = int(vmem_cap * 3 // 4)              # headroom for Mosaic scratch/spills

    wbytes = 2 if use_bf16 else 4
    weight_bytes = (wbytes * (Hp * HHp + HHp * HHp + HHp * C2p)
                    + 4 * (2 * HHp + C2p + 2 * Hp + depth * Hp))
    act_budget = max(vmem_budget - 2 * weight_bytes, 4 << 20)
    # double-buffered x + out tiles, plus hn/h1/h2 intermediates (and bf16 copies)
    per_row_bytes = 4 * (2 * Hp + 2 * C2p + Hp + 2 * HHp)
    if use_bf16:
        per_row_bytes += 2 * (Hp + 2 * HHp)

    # ---- token tile (rows), padded token count ----
    if token_tile is None:
        tn = _choose_token_tile(N, per_row_bytes, act_budget)
    else:
        tn = max(8, (min(token_tile, _round_up(N, 8)) // 8) * 8)
    Np = _round_up(N, tn)
    num_tiles = Np // tn

    xf = x.reshape(N, H).astype(f32)
    if Np != N or Hp != H:
        x2d = jnp.zeros((Np, Hp), f32).at[:N, :H].set(xf)
    else:
        x2d = xf                                      # no extra padded HBM copy

    # ---- advisory cost estimate (logical work) ----
    flops = 2 * depth * N * (H * HH + HH * HH + HH * C2)
    weight_elems = Hp * HHp + HHp * HHp + HHp * C2p + 2 * HHp + C2p + 2 * Hp
    bytes_accessed = 4 * (N * H + depth * Hp + weight_elems) + 4 * depth * Np * C2p
    cost = pl.CostEstimate(flops=int(flops),
                           transcendentals=int(depth * N),
                           bytes_accessed=int(bytes_accessed))

    h_is_padded = (Hp != H)
    kernel = functools.partial(film_kernel, h_valid=H, h_is_padded=h_is_padded)

    def _run(single_buffer_weights):
        if single_buffer_weights:
            def cs(shape):
                return pl.BlockSpec(shape, lambda n, d: (0, 0),
                                    pipeline_mode=pl.Buffered(1))
        else:
            def cs(shape):
                return pl.BlockSpec(shape, lambda n, d: (0, 0))

        return pl.pallas_call(
            kernel,
            out_shape=jax.ShapeDtypeStruct((depth, Np, C2p), f32),
            grid=(num_tiles, depth),
            in_specs=[
                pl.BlockSpec((tn, Hp), lambda n, d: (n, 0)),  # x token tile
                cs((depth, Hp)),                              # resident layer-emb table
                cs((1, Hp)),                                  # LN gamma
                cs((1, Hp)),                                  # LN beta
                cs((Hp, HHp)),                                # W1
                cs((1, HHp)),                                 # b1
                cs((HHp, HHp)),                               # W2
                cs((1, HHp)),                                 # b2
                cs((HHp, C2p)),                               # fused [Ws|Wb]
                cs((1, C2p)),                                 # fused [bs|bb]
            ],
            out_specs=pl.BlockSpec((None, tn, C2p), lambda n, d: (d, n, 0)),
            compiler_params=pltpu.CompilerParams(
                dimension_semantics=("parallel", "parallel"),
                vmem_limit_bytes=vmem_budget),
            cost_estimate=cost,
        )(x2d, emb_p, gamma, beta, w1, b1, w2, b2, wh, bh)

    try:
        out = _run(True)
    except Exception:
        # Installed Pallas rejected single-buffering; fall back to default buffering.
        out = _run(False)

    scales = out[:, :N, :C].reshape(depth, B, T, C)
    biases = out[:, :N, C:C2].reshape(depth, B, T, C)
    return scales, biases


def reference_forward(x, params):
    """Pure-JAX reference mirroring the PyTorch forward."""
    B, T, H = x.shape
    x2d = x.reshape(B * T, H)
    depth = params["emb"].shape[0]
    scales, biases = [], []
    for d in range(depth):
        h = x2d + params["emb"][d][None, :]
        mean = jnp.mean(h, axis=-1, keepdims=True)
        var = jnp.mean((h - mean) ** 2, axis=-1, keepdims=True)
        hn = (h - mean) / jnp.sqrt(var + 1e-6) * params["gamma"] + params["beta"]
        h1 = jnp.maximum(hn @ params["w1"] + params["b1"], 0.0)
        h2 = jnp.maximum(h1 @ params["w2"] + params["b2"], 0.0)
        scales.append((h2 @ params["ws"] + params["bs"]).reshape(B, T, -1))
        biases.append((h2 @ params["wb"] + params["bb"]).reshape(B, T, -1))
    return jnp.stack(scales), jnp.stack(biases)


def init_params(key, hidden, channel, depth):
    hh = hidden // 2
    ks = jax.random.split(key, 8)
    f32 = jnp.float32
    return {
        "emb":   0.1 * jax.random.normal(ks[0], (depth, hidden), f32),
        "gamma": jnp.ones((1, hidden), f32),
        "beta":  jnp.zeros((1, hidden), f32),
        "w1":    0.1 * jax.random.normal(ks[1], (hidden, hh), f32),
        "b1":    0.01 * jax.random.normal(ks[2], (1, hh), f32),
        "w2":    0.1 * jax.random.normal(ks[3], (hh, hh), f32),
        "b2":    0.01 * jax.random.normal(ks[4], (1, hh), f32),
        "ws":    0.1 * jax.random.normal(ks[5], (hh, channel), f32),
        "bs":    jnp.zeros((1, channel), f32),
        "wb":    0.1 * jax.random.normal(ks[6], (hh, channel), f32),
        "bb":    jnp.zeros((1, channel), f32),
    }


if __name__ == "__main__":
    B, T, hidden, channel, depth = 2, 8, 32, 4, 3
    key = jax.random.PRNGKey(0)
    kx, kp = jax.random.split(key)
    x = jax.random.normal(kx, (B, T, hidden), jnp.float32)
    params = init_params(kp, hidden, channel, depth)

    ref_s, ref_b = reference_forward(x, params)

    # f32 path: tight tolerance.
    scales, biases = film_generator_forward(x, params, use_bf16=False)
    jax.block_until_ready((scales, biases))
    assert scales.shape == (depth, B, T, channel)
    assert biases.shape == (depth, B, T, channel)
    assert jnp.allclose(scales, ref_s, atol=1e-5, rtol=1e-5)
    assert jnp.allclose(biases, ref_b, atol=1e-5, rtol=1e-5)

    # bf16-MXU path (pre-cast weights): looser tolerance, gated on the flag.
    scales_bf, biases_bf = film_generator_forward(x, params, use_bf16=True)
    jax.block_until_ready((scales_bf, biases_bf))
    assert jnp.allclose(scales_bf, ref_s, atol=5e-2, rtol=5e-2)
    assert jnp.allclose(biases_bf, ref_b, atol=5e-2, rtol=5e-2)

    print("KERNEL_OK")
</pallas_src>

<mosaic_0001>
module attributes {stable_mosaic.version = 11 : i64} {
  func.func @film_kernel(%arg0: i32, %arg1: i32, %arg2: memref<16x128xf32, #tpu.memory_space<vmem>>, %arg3: memref<3x128xf32, #tpu.memory_space<vmem>>, %arg4: memref<1x128xf32, #tpu.memory_space<vmem>>, %arg5: memref<1x128xf32, #tpu.memory_space<vmem>>, %arg6: memref<128x128xf32, #tpu.memory_space<vmem>>, %arg7: memref<1x128xf32, #tpu.memory_space<vmem>>, %arg8: memref<128x128xf32, #tpu.memory_space<vmem>>, %arg9: memref<1x128xf32, #tpu.memory_space<vmem>>, %arg10: memref<128x128xf32, #tpu.memory_space<vmem>>, %arg11: memref<1x128xf32, #tpu.memory_space<vmem>>, %arg12: memref<1x16x128xf32, #tpu.memory_space<vmem>>) attributes {dimension_semantics = [#tpu.dimension_semantics<parallel>, #tpu.dimension_semantics<parallel>], iteration_bounds = array<i64: 1, 3>, scalar_prefetch = 0 : i64, scratch_operands = 0 : i64, tpu.core_type = #tpu.core_type<tc>, window_params = [{transform_indices = @transform_0, window_bounds = array<i64: 16, 128>}, {pipeline_mode = #tpu.pipeline_mode<synchronous>, transform_indices = @transform_1, window_bounds = array<i64: 3, 128>}, {pipeline_mode = #tpu.pipeline_mode<synchronous>, transform_indices = @transform_2, window_bounds = array<i64: 1, 128>}, {pipeline_mode = #tpu.pipeline_mode<synchronous>, transform_indices = @transform_3, window_bounds = array<i64: 1, 128>}, {pipeline_mode = #tpu.pipeline_mode<synchronous>, transform_indices = @transform_4, window_bounds = array<i64: 128, 128>}, {pipeline_mode = #tpu.pipeline_mode<synchronous>, transform_indices = @transform_5, window_bounds = array<i64: 1, 128>}, {pipeline_mode = #tpu.pipeline_mode<synchronous>, transform_indices = @transform_6, window_bounds = array<i64: 128, 128>}, {pipeline_mode = #tpu.pipeline_mode<synchronous>, transform_indices = @transform_7, window_bounds = array<i64: 1, 128>}, {pipeline_mode = #tpu.pipeline_mode<synchronous>, transform_indices = @transform_8, window_bounds = array<i64: 128, 128>}, {pipeline_mode = #tpu.pipeline_mode<synchronous>, transform_indices = @transform_9, window_bounds = array<i64: 1, 128>}, {transform_indices = @transform_10, window_bounds = array<i64: 1, 16, 128>}]} {
    %c0 = arith.constant 0 : index
    %c0_0 = arith.constant 0 : index
    %0 = vector.load %arg2[%c0, %c0_0] : memref<16x128xf32, #tpu.memory_space<vmem>>, vector<16x128xf32>
    %1 = arith.index_cast %arg1 : i32 to index
    %c0_1 = arith.constant 0 : index
    %2 = vector.load %arg3[%1, %c0_1] : memref<3x128xf32, #tpu.memory_space<vmem>>, vector<1x128xf32>
    %3 = vector.broadcast %2 : vector<1x128xf32> to vector<16x128xf32>
    %4 = arith.addf %0, %3 : vector<16x128xf32>
    %cst = arith.constant dense<0.000000e+00> : vector<16xf32>
    %5 = vector.multi_reduction <add>, %4, %cst [1] : vector<16x128xf32> to vector<16xf32>
    %6 = vector.shape_cast %5 : vector<16xf32> to vector<16x1xf32>
    %cst_2 = arith.constant 3.125000e-02 : f32
    %7 = vector.broadcast %cst_2 : f32 to vector<16x1xf32>
    %8 = arith.mulf %6, %7 : vector<16x1xf32>
    %9 = vector.broadcast %8 : vector<16x1xf32> to vector<16x128xf32>
    %10 = arith.subf %4, %9 : vector<16x128xf32>
    %11 = tpu.iota {dimensions = array<i32: 1>} : vector<16x128xi32>
    %c32_i32 = arith.constant 32 : i32
    %12 = vector.broadcast %c32_i32 : i32 to vector<16x128xi32>
    %13 = arith.cmpi slt, %11, %12 : vector<16x128xi32>
    %cst_3 = arith.constant 0.000000e+00 : f32
    %14 = vector.broadcast %cst_3 : f32 to vector<16x128xf32>
    %15 = arith.select %13, %10, %14 : vector<16x128xi1>, vector<16x128xf32>
    %16 = arith.mulf %15, %15 : vector<16x128xf32>
    %cst_4 = arith.constant dense<0.000000e+00> : vector<16xf32>
    %17 = vector.multi_reduction <add>, %16, %cst_4 [1] : vector<16x128xf32> to vector<16xf32>
    %18 = vector.shape_cast %17 : vector<16xf32> to vector<16x1xf32>
    %cst_5 = arith.constant 3.125000e-02 : f32
    %19 = vector.broadcast %cst_5 : f32 to vector<16x1xf32>
    %20 = arith.mulf %18, %19 : vector<16x1xf32>
    %cst_6 = arith.constant 9.99999997E-7 : f32
    %21 = vector.broadcast %cst_6 : f32 to vector<16x1xf32>
    %22 = arith.addf %20, %21 : vector<16x1xf32>
    %23 = math.rsqrt %22 : vector<16x1xf32>
    %24 = vector.broadcast %23 : vector<16x1xf32> to vector<16x128xf32>
    %25 = arith.mulf %15, %24 : vector<16x128xf32>
    %c0_7 = arith.constant 0 : index
    %c0_8 = arith.constant 0 : index
    %26 = vector.load %arg4[%c0_7, %c0_8] : memref<1x128xf32, #tpu.memory_space<vmem>>, vector<1x128xf32>
    %27 = vector.broadcast %26 : vector<1x128xf32> to vector<16x128xf32>
    %28 = arith.mulf %25, %27 : vector<16x128xf32>
    %c0_9 = arith.constant 0 : index
    %c0_10 = arith.constant 0 : index
    %29 = vector.load %arg5[%c0_9, %c0_10] : memref<1x128xf32, #tpu.memory_space<vmem>>, vector<1x128xf32>
    %30 = vector.broadcast %29 : vector<1x128xf32> to vector<16x128xf32>
    %31 = arith.addf %28, %30 : vector<16x128xf32>
    %c0_11 = arith.constant 0 : index
    %c0_12 = arith.constant 0 : index
    %32 = vector.load %arg6[%c0_11, %c0_12] : memref<128x128xf32, #tpu.memory_space<vmem>>, vector<128x128xf32>
    %cst_13 = arith.constant dense<0.000000e+00> : vector<16x128xf32>
    %33 = tpu.matmul %31, %32, %cst_13 {dimension_numbers = #tpu.dot_dimension_numbers<[1], [0], [0], [1], [0, 0, 1, 1], [], []>} : vector<16x128xf32>, vector<128x128xf32>, vector<16x128xf32> -> vector<16x128xf32>
    %c0_14 = arith.constant 0 : index
    %c0_15 = arith.constant 0 : index
    %34 = vector.load %arg7[%c0_14, %c0_15] : memref<1x128xf32, #tpu.memory_space<vmem>>, vector<1x128xf32>
    %35 = vector.broadcast %34 : vector<1x128xf32> to vector<16x128xf32>
    %36 = arith.addf %33, %35 : vector<16x128xf32>
    %cst_16 = arith.constant 0.000000e+00 : f32
    %37 = vector.broadcast %cst_16 : f32 to vector<16x128xf32>
    %38 = arith.maximumf %36, %37 : vector<16x128xf32>
    %c0_17 = arith.constant 0 : index
    %c0_18 = arith.constant 0 : index
    %39 = vector.load %arg8[%c0_17, %c0_18] : memref<128x128xf32, #tpu.memory_space<vmem>>, vector<128x128xf32>
    %cst_19 = arith.constant dense<0.000000e+00> : vector<16x128xf32>
    %40 = tpu.matmul %38, %39, %cst_19 {dimension_numbers = #tpu.dot_dimension_numbers<[1], [0], [0], [1], [0, 0, 1, 1], [], []>} : vector<16x128xf32>, vector<128x128xf32>, vector<16x128xf32> -> vector<16x128xf32>
    %c0_20 = arith.constant 0 : index
    %c0_21 = arith.constant 0 : index
    %41 = vector.load %arg9[%c0_20, %c0_21] : memref<1x128xf32, #tpu.memory_space<vmem>>, vector<1x128xf32>
    %42 = vector.broadcast %41 : vector<1x128xf32> to vector<16x128xf32>
    %43 = arith.addf %40, %42 : vector<16x128xf32>
    %cst_22 = arith.constant 0.000000e+00 : f32
    %44 = vector.broadcast %cst_22 : f32 to vector<16x128xf32>
    %45 = arith.maximumf %43, %44 : vector<16x128xf32>
    %c0_23 = arith.constant 0 : index
    %c0_24 = arith.constant 0 : index
    %46 = vector.load %arg10[%c0_23, %c0_24] : memref<128x128xf32, #tpu.memory_space<vmem>>, vector<128x128xf32>
    %cst_25 = arith.constant dense<0.000000e+00> : vector<16x128xf32>
    %47 = tpu.matmul %45, %46, %cst_25 {dimension_numbers = #tpu.dot_dimension_numbers<[1], [0], [0], [1], [0, 0, 1, 1], [], []>} : vector<16x128xf32>, vector<128x128xf32>, vector<16x128xf32> -> vector<16x128xf32>
    %c0_26 = arith.constant 0 : index
    %c0_27 = arith.constant 0 : index
    %48 = vector.load %arg11[%c0_26, %c0_27] : memref<1x128xf32, #tpu.memory_space<vmem>>, vector<1x128xf32>
    %49 = vector.broadcast %48 : vector<1x128xf32> to vector<16x128xf32>
    %50 = arith.addf %47, %49 : vector<16x128xf32>
    %c0_28 = arith.constant 0 : index
    %c0_29 = arith.constant 0 : index
    %c0_30 = arith.constant 0 : index
    %51 = vector.load %arg12[%c0_28, %c0_29, %c0_30] : memref<1x16x128xf32, #tpu.memory_space<vmem>>, vector<1x16x128xf32>
    %52 = vector.shape_cast %51 : vector<1x16x128xf32> to vector<16x128xf32>
    %53 = vector.shape_cast %50 : vector<16x128xf32> to vector<1x16x128xf32>
    tpu.vector_store %arg12[%c0_28, %c0_29, %c0_30], %53 {strides = array<i32>} : memref<1x16x128xf32, #tpu.memory_space<vmem>>, vector<1x16x128xf32>,
    return
  }
  func.func @transform_0(%arg0: i32, %arg1: i32) -> (i32, i32) {
    %c0_i32 = arith.constant 0 : i32
    %c0_i32_0 = arith.constant 0 : i32
    return %arg0, %c0_i32 : i32, i32
  }
  func.func @transform_1(%arg0: i32, %arg1: i32) -> (i32, i32) {
    %c0_i32 = arith.constant 0 : i32
    %c0_i32_0 = arith.constant 0 : i32
    %c0_i32_1 = arith.constant 0 : i32
    return %c0_i32, %c0_i32_0 : i32, i32
  }
  func.func @transform_2(%arg0: i32, %arg1: i32) -> (i32, i32) {
    %c0_i32 = arith.constant 0 : i32
    %c0_i32_0 = arith.constant 0 : i32
    %c0_i32_1 = arith.constant 0 : i32
    return %c0_i32, %c0_i32_0 : i32, i32
  }
  func.func @transform_3(%arg0: i32, %arg1: i32) -> (i32, i32) {
    %c0_i32 = arith.constant 0 : i32
    %c0_i32_0 = arith.constant 0 : i32
    %c0_i32_1 = arith.constant 0 : i32
    return %c0_i32, %c0_i32_0 : i32, i32
  }
  func.func @transform_4(%arg0: i32, %arg1: i32) -> (i32, i32) {
    %c0_i32 = arith.constant 0 : i32
    %c0_i32_0 = arith.constant 0 : i32
    %c0_i32_1 = arith.constant 0 : i32
    return %c0_i32, %c0_i32_0 : i32, i32
  }
  func.func @transform_5(%arg0: i32, %arg1: i32) -> (i32, i32) {
    %c0_i32 = arith.constant 0 : i32
    %c0_i32_0 = arith.constant 0 : i32
    %c0_i32_1 = arith.constant 0 : i32
    return %c0_i32, %c0_i32_0 : i32, i32
  }
  func.func @transform_6(%arg0: i32, %arg1: i32) -> (i32, i32) {
    %c0_i32 = arith.constant 0 : i32
    %c0_i32_0 = arith.constant 0 : i32
    %c0_i32_1 = arith.constant 0 : i32
    return %c0_i32, %c0_i32_0 : i32, i32
  }
  func.func @transform_7(%arg0: i32, %arg1: i32) -> (i32, i32) {
    %c0_i32 = arith.constant 0 : i32
    %c0_i32_0 = arith.constant 0 : i32
    %c0_i32_1 = arith.constant 0 : i32
    return %c0_i32, %c0_i32_0 : i32, i32
  }
  func.func @transform_8(%arg0: i32, %arg1: i32) -> (i32, i32) {
    %c0_i32 = arith.constant 0 : i32
    %c0_i32_0 = arith.constant 0 : i32
    %c0_i32_1 = arith.constant 0 : i32
    return %c0_i32, %c0_i32_0 : i32, i32
  }
  func.func @transform_9(%arg0: i32, %arg1: i32) -> (i32, i32) {
    %c0_i32 = arith.constant 0 : i32
    %c0_i32_0 = arith.constant 0 : i32
    %c0_i32_1 = arith.constant 0 : i32
    return %c0_i32, %c0_i32_0 : i32, i32
  }
  func.func @transform_10(%arg0: i32, %arg1: i32) -> (i32, i32, i32) {
    %c0_i32 = arith.constant 0 : i32
    %c0_i32_0 = arith.constant 0 : i32
    return %arg1, %arg0, %c0_i32 : i32, i32, i32
  }
}

module attributes {stable_mosaic.version = 11 : i64} {
  func.func @film_kernel(%arg0: i32, %arg1: i32, %arg2: memref<16x128xf32, #tpu.memory_space<vmem>>, %arg3: memref<3x128xf32, #tpu.memory_space<vmem>>, %arg4: memref<1x128xf32, #tpu.memory_space<vmem>>, %arg5: memref<1x128xf32, #tpu.memory_space<vmem>>, %arg6: memref<128x128xf32, #tpu.memory_space<vmem>>, %arg7: memref<1x128xf32, #tpu.memory_space<vmem>>, %arg8: memref<128x128xf32, #tpu.memory_space<vmem>>, %arg9: memref<1x128xf32, #tpu.memory_space<vmem>>, %arg10: memref<128x128xf32, #tpu.memory_space<vmem>>, %arg11: memref<1x128xf32, #tpu.memory_space<vmem>>, %arg12: memref<1x16x128xf32, #tpu.memory_space<vmem>>) attributes {dimension_semantics = [#tpu.dimension_semantics<parallel>, #tpu.dimension_semantics<parallel>], iteration_bounds = array<i64: 1, 3>, scalar_prefetch = 0 : i64, scratch_operands = 0 : i64, tpu.core_type = #tpu.core_type<tc>, window_params = [{transform_indices = @transform_0, window_bounds = array<i64: 16, 128>}, {pipeline_mode = #tpu.pipeline_mode<synchronous>, transform_indices = @transform_1, window_bounds = array<i64: 3, 128>}, {pipeline_mode = #tpu.pipeline_mode<synchronous>, transform_indices = @transform_2, window_bounds = array<i64: 1, 128>}, {pipeline_mode = #tpu.pipeline_mode<synchronous>, transform_indices = @transform_3, window_bounds = array<i64: 1, 128>}, {pipeline_mode = #tpu.pipeline_mode<synchronous>, transform_indices = @transform_4, window_bounds = array<i64: 128, 128>}, {pipeline_mode = #tpu.pipeline_mode<synchronous>, transform_indices = @transform_5, window_bounds = array<i64: 1, 128>}, {pipeline_mode = #tpu.pipeline_mode<synchronous>, transform_indices = @transform_6, window_bounds = array<i64: 128, 128>}, {pipeline_mode = #tpu.pipeline_mode<synchronous>, transform_indices = @transform_7, window_bounds = array<i64: 1, 128>}, {pipeline_mode = #tpu.pipeline_mode<synchronous>, transform_indices = @transform_8, window_bounds = array<i64: 128, 128>}, {pipeline_mode = #tpu.pipeline_mode<synchronous>, transform_indices = @transform_9, window_bounds = array<i64: 1, 128>}, {transform_indices = @transform_10, window_bounds = array<i64: 1, 16, 128>}]} {
    %c0 = arith.constant 0 : index
    %c0_0 = arith.constant 0 : index
    %0 = vector.load %arg2[%c0, %c0_0] : memref<16x128xf32, #tpu.memory_space<vmem>>, vector<16x128xf32>
    %1 = arith.index_cast %arg1 : i32 to index
    %c0_1 = arith.constant 0 : index
    %2 = vector.load %arg3[%1, %c0_1] : memref<3x128xf32, #tpu.memory_space<vmem>>, vector<1x128xf32>
    %3 = vector.broadcast %2 : vector<1x128xf32> to vector<16x128xf32>
    %4 = arith.addf %0, %3 : vector<16x128xf32>
    %cst = arith.constant dense<0.000000e+00> : vector<16xf32>
    %5 = vector.multi_reduction <add>, %4, %cst [1] : vector<16x128xf32> to vector<16xf32>
    %6 = vector.shape_cast %5 : vector<16xf32> to vector<16x1xf32>
    %cst_2 = arith.constant 3.125000e-02 : f32
    %7 = vector.broadcast %cst_2 : f32 to vector<16x1xf32>
    %8 = arith.mulf %6, %7 : vector<16x1xf32>
    %9 = vector.broadcast %8 : vector<16x1xf32> to vector<16x128xf32>
    %10 = arith.subf %4, %9 : vector<16x128xf32>
    %11 = tpu.iota {dimensions = array<i32: 1>} : vector<16x128xi32>
    %c32_i32 = arith.constant 32 : i32
    %12 = vector.broadcast %c32_i32 : i32 to vector<16x128xi32>
    %13 = arith.cmpi slt, %11, %12 : vector<16x128xi32>
    %cst_3 = arith.constant 0.000000e+00 : f32
    %14 = vector.broadcast %cst_3 : f32 to vector<16x128xf32>
    %15 = arith.select %13, %10, %14 : vector<16x128xi1>, vector<16x128xf32>
    %16 = arith.mulf %15, %15 : vector<16x128xf32>
    %cst_4 = arith.constant dense<0.000000e+00> : vector<16xf32>
    %17 = vector.multi_reduction <add>, %16, %cst_4 [1] : vector<16x128xf32> to vector<16xf32>
    %18 = vector.shape_cast %17 : vector<16xf32> to vector<16x1xf32>
    %cst_5 = arith.constant 3.125000e-02 : f32
    %19 = vector.broadcast %cst_5 : f32 to vector<16x1xf32>
    %20 = arith.mulf %18, %19 : vector<16x1xf32>
    %cst_6 = arith.constant 9.99999997E-7 : f32
    %21 = vector.broadcast %cst_6 : f32 to vector<16x1xf32>
    %22 = arith.addf %20, %21 : vector<16x1xf32>
    %23 = math.rsqrt %22 : vector<16x1xf32>
    %24 = vector.broadcast %23 : vector<16x1xf32> to vector<16x128xf32>
    %25 = arith.mulf %15, %24 : vector<16x128xf32>
    %c0_7 = arith.constant 0 : index
    %c0_8 = arith.constant 0 : index
    %26 = vector.load %arg4[%c0_7, %c0_8] : memref<1x128xf32, #tpu.memory_space<vmem>>, vector<1x128xf32>
    %27 = vector.broadcast %26 : vector<1x128xf32> to vector<16x128xf32>
    %28 = arith.mulf %25, %27 : vector<16x128xf32>
    %c0_9 = arith.constant 0 : index
    %c0_10 = arith.constant 0 : index
    %29 = vector.load %arg5[%c0_9, %c0_10] : memref<1x128xf32, #tpu.memory_space<vmem>>, vector<1x128xf32>
    %30 = vector.broadcast %29 : vector<1x128xf32> to vector<16x128xf32>
    %31 = arith.addf %28, %30 : vector<16x128xf32>
    %c0_11 = arith.constant 0 : index
    %c0_12 = arith.constant 0 : index
    %32 = vector.load %arg6[%c0_11, %c0_12] : memref<128x128xf32, #tpu.memory_space<vmem>>, vector<128x128xf32>
    %cst_13 = arith.constant dense<0.000000e+00> : vector<16x128xf32>
    %33 = tpu.matmul %31, %32, %cst_13 {dimension_numbers = #tpu.dot_dimension_numbers<[1], [0], [0], [1], [0, 0, 1, 1], [], []>} : vector<16x128xf32>, vector<128x128xf32>, vector<16x128xf32> -> vector<16x128xf32>
    %c0_14 = arith.constant 0 : index
    %c0_15 = arith.constant 0 : index
    %34 = vector.load %arg7[%c0_14, %c0_15] : memref<1x128xf32, #tpu.memory_space<vmem>>, vector<1x128xf32>
    %35 = vector.broadcast %34 : vector<1x128xf32> to vector<16x128xf32>
    %36 = arith.addf %33, %35 : vector<16x128xf32>
    %cst_16 = arith.constant 0.000000e+00 : f32
    %37 = vector.broadcast %cst_16 : f32 to vector<16x128xf32>
    %38 = arith.maximumf %36, %37 : vector<16x128xf32>
    %c0_17 = arith.constant 0 : index
    %c0_18 = arith.constant 0 : index
    %39 = vector.load %arg8[%c0_17, %c0_18] : memref<128x128xf32, #tpu.memory_space<vmem>>, vector<128x128xf32>
    %cst_19 = arith.constant dense<0.000000e+00> : vector<16x128xf32>
    %40 = tpu.matmul %38, %39, %cst_19 {dimension_numbers = #tpu.dot_dimension_numbers<[1], [0], [0], [1], [0, 0, 1, 1], [], []>} : vector<16x128xf32>, vector<128x128xf32>, vector<16x128xf32> -> vector<16x128xf32>
    %c0_20 = arith.constant 0 : index
    %c0_21 = arith.constant 0 : index
    %41 = vector.load %arg9[%c0_20, %c0_21] : memref<1x128xf32, #tpu.memory_space<vmem>>, vector<1x128xf32>
    %42 = vector.broadcast %41 : vector<1x128xf32> to vector<16x128xf32>
    %43 = arith.addf %40, %42 : vector<16x128xf32>
    %cst_22 = arith.constant 0.000000e+00 : f32
    %44 = vector.broadcast %cst_22 : f32 to vector<16x128xf32>
    %45 = arith.maximumf %43, %44 : vector<16x128xf32>
    %c0_23 = arith.constant 0 : index
    %c0_24 = arith.constant 0 : index
    %46 = vector.load %arg10[%c0_23, %c0_24] : memref<128x128xf32, #tpu.memory_space<vmem>>, vector<128x128xf32>
    %cst_25 = arith.constant dense<0.000000e+00> : vector<16x128xf32>
    %47 = tpu.matmul %45, %46, %cst_25 {dimension_numbers = #tpu.dot_dimension_numbers<[1], [0], [0], [1], [0, 0, 1, 1], [], []>} : vector<16x128xf32>, vector<128x128xf32>, vector<16x128xf32> -> vector<16x128xf32>
    %c0_26 = arith.constant 0 : index
    %c0_27 = arith.constant 0 : index
    %48 = vector.load %arg11[%c0_26, %c0_27] : memref<1x128xf32, #tpu.memory_space<vmem>>, vector<1x128xf32>
    %49 = vector.broadcast %48 : vector<1x128xf32> to vector<16x128xf32>
    %50 = arith.addf %47, %49 : vector<16x128xf32>
    %c0_28 = arith.constant 0 : index
    %c0_29 = arith.constant 0 : index
    %c0_30 = arith.constant 0 : index
    %51 = vector.load %arg12[%c0_28, %c0_29, %c0_30] : memref<1x16x128xf32, #tpu.memory_space<vmem>>, vector<1x16x128xf32>
    %52 = vector.shape_cast %51 : vector<1x16x128xf32> to vector<16x128xf32>
    %53 = vector.shape_cast %50 : vector<16x128xf32> to vector<1x16x128xf32>
    tpu.vector_store %arg12[%c0_28, %c0_29, %c0_30], %53 {strides = array<i32>} : memref<1x16x128xf32, #tpu.memory_space<vmem>>, vector<1x16x128xf32>,
    return
  }
  func.func @transform_0(%arg0: i32, %arg1: i32) -> (i32, i32) {
    %c0_i32 = arith.constant 0 : i32
    %c0_i32_0 = arith.constant 0 : i32
    return %arg0, %c0_i32 : i32, i32
  }
  func.func @transform_1(%arg0: i32, %arg1: i32) -> (i32, i32) {
    %c0_i32 = arith.constant 0 : i32
    %c0_i32_0 = arith.constant 0 : i32
    %c0_i32_1 = arith.constant 0 : i32
    return %c0_i32, %c0_i32_0 : i32, i32
  }
  func.func @transform_2(%arg0: i32, %arg1: i32) -> (i32, i32) {
    %c0_i32 = arith.constant 0 : i32
    %c0_i32_0 = arith.constant 0 : i32
    %c0_i32_1 = arith.constant 0 : i32
    return %c0_i32, %c0_i32_0 : i32, i32
  }
  func.func @transform_3(%arg0: i32, %arg1: i32) -> (i32, i32) {
    %c0_i32 = arith.constant 0 : i32
    %c0_i32_0 = arith.constant 0 : i32
    %c0_i32_1 = arith.constant 0 : i32
    return %c0_i32, %c0_i32_0 : i32, i32
  }
  func.func @transform_4(%arg0: i32, %arg1: i32) -> (i32, i32) {
    %c0_i32 = arith.constant 0 : i32
    %c0_i32_0 = arith.constant 0 : i32
    %c0_i32_1 = arith.constant 0 : i32
    return %c0_i32, %c0_i32_0 : i32, i32
  }
  func.func @transform_5(%arg0: i32, %arg1: i32) -> (i32, i32) {
    %c0_i32 = arith.constant 0 : i32
    %c0_i32_0 = arith.constant 0 : i32
    %c0_i32_1 = arith.constant 0 : i32
    return %c0_i32, %c0_i32_0 : i32, i32
  }
  func.func @transform_6(%arg0: i32, %arg1: i32) -> (i32, i32) {
    %c0_i32 = arith.constant 0 : i32
    %c0_i32_0 = arith.constant 0 : i32
    %c0_i32_1 = arith.constant 0 : i32
    return %c0_i32, %c0_i32_0 : i32, i32
  }
  func.func @transform_7(%arg0: i32, %arg1: i32) -> (i32, i32) {
    %c0_i32 = arith.constant 0 : i32
    %c0_i32_0 = arith.constant 0 : i32
    %c0_i32_1 = arith.constant 0 : i32
    return %c0_i32, %c0_i32_0 : i32, i32
  }
  func.func @transform_8(%arg0: i32, %arg1: i32) -> (i32, i32) {
    %c0_i32 = arith.constant 0 : i32
    %c0_i32_0 = arith.constant 0 : i32
    %c0_i32_1 = arith.constant 0 : i32
    return %c0_i32, %c0_i32_0 : i32, i32
  }
  func.func @transform_9(%arg0: i32, %arg1: i32) -> (i32, i32) {
    %c0_i32 = arith.constant 0 : i32
    %c0_i32_0 = arith.constant 0 : i32
    %c0_i32_1 = arith.constant 0 : i32
    return %c0_i32, %c0_i32_0 : i32, i32
  }
  func.func @transform_10(%arg0: i32, %arg1: i32) -> (i32, i32, i32) {
    %c0_i32 = arith.constant 0 : i32
    %c0_i32_0 = arith.constant 0 : i32
    return %arg1, %arg0, %c0_i32 : i32, i32, i32
  }
}

</mosaic_0001>

<llo_original>
// kernel: tpu_custom_call.1
$region0: #{tpu_custom_call.1}
  #allocation0 [shape = 'u32[]', space=smem, size = 0x4, offset = 0x4, fixed_abs, tag = 'smem constant byte address 0x4 - core index']
  #allocation1 [shape = 'u32[144,128]{1,0:T(1,128)}', space=vmem, size = 0x12000, scoped, tag = 'internal scratch']
  %s0 = inlined_call_operand.hbm [shape: f32[16,128], index: 0, kind: input, shape index: {}]
  %s1 = inlined_call_operand.hbm [shape: f32[3,128], index: 1, kind: input, shape index: {}]
  %s2 = inlined_call_operand.vmem [shape: f32[1,128], index: 2, kind: input, shape index: {}]
  %s3 = inlined_call_operand.vmem [shape: f32[1,128], index: 3, kind: input, shape index: {}]
  %s4 = inlined_call_operand.hbm [shape: f32[128,128], index: 4, kind: input, shape index: {}]
  %s5 = inlined_call_operand.vmem [shape: f32[1,128], index: 5, kind: input, shape index: {}]
  %s6 = inlined_call_operand.hbm [shape: f32[128,128], index: 6, kind: input, shape index: {}]
  %s7 = inlined_call_operand.vmem [shape: f32[1,128], index: 7, kind: input, shape index: {}]
  %s8 = inlined_call_operand.hbm [shape: f32[128,128], index: 8, kind: input, shape index: {}]
  %s9 = inlined_call_operand.vmem [shape: f32[1,128], index: 9, kind: input, shape index: {}]
  %s10 = inlined_call_operand.hbm [shape: f32[3,16,128], index: 10, kind: output, shape index: {}]
  %s11 = sld [smem:[#allocation0]]
  $region93: #{tpu_custom_call.1} parent=0
    _
  %s13 = ssub.s32 1, %s11
  %s14 = scalar_select 0, %s13, %s11
  $region1: #{tpu_custom_call.1} parent=0
    #allocation2 [shape = 'u8[8192]{0}', space=vmem, size = 0x2000, scoped, tag = 'input window, operand 0, single buffered']
    #allocation3 [shape = 's32[2]{0}', space=sflag, size = 0x8, scoped, tag = 'scoped memory for tpu_custom_call.1']
    #allocation4 [shape = 's32[2]{0}', space=sflag, size = 0x8, scoped, tag = 'scoped memory for tpu_custom_call.1']
    #allocation5 [shape = 'u8[2048]{0}', space=vmem, size = 0x800, scoped, tag = 'input window, operand 1, single buffered']
    #allocation6 [shape = 's32[1]{0}', space=sflag, size = 0x4, scoped, tag = 'scoped memory for tpu_custom_call.1']
    #allocation7 [shape = 'u8[65536]{0}', space=vmem, size = 0x10000, scoped, tag = 'input window, operand 4, single buffered']
    #allocation8 [shape = 'u8[65536]{0}', space=vmem, size = 0x10000, scoped, tag = 'input window, operand 6, single buffered']
    #allocation9 [shape = 's32[1]{0}', space=sflag, size = 0x4, scoped, tag = 'scoped memory for tpu_custom_call.1']
    #allocation10 [shape = 'u8[65536]{0}', space=vmem, size = 0x10000, scoped, tag = 'input window, operand 8, single buffered']
    #allocation11 [shape = 'u8[16384]{0}', space=vmem, size = 0x4000, scoped, tag = 'output window, operand 0']
    %15 = vsyncpa [#allocation3], 0
    %16 = vsyncpa [#allocation6], 0
    %17 = vsyncpa [#allocation9], 0
    %18 = vsyncpa [#allocation4], 0
    %s19 = scalar_lea.sflag [#allocation4], 1
    %20 = vsyncpa %s19, 0
    loop: start=0, step=1, limit=5
    $region2: #{tpu_custom_call.1} parent=1 // loop_pre_header
      _
    $region3: #{tpu_custom_call.1} parent=1 // loop_header
      %s22 = sphi 0, %s26
      %p23 = scmp.ge.s32.totalorder %s22, 5
      %s29 = sphi 0, %s41
      %s30 = sphi 0, %s37
      %s31 = sphi 0, %s29
      %s32 = sphi 0, %s30
      %s33 = sphi 0, %s31
      %s34 = sphi 0, %s32
      %s44 = sphi 0, %s46
      %s47 = sphi 0, %s44
      %s48 = sphi 0, %s47
      %s64 = sphi 0, %s48
      %s68 = sphi 0, %s68
      %s70 = sphi 0, %s68
      %s71 = sphi 0, %s70
      %s85 = sphi 0, %s71
      %s89 = sphi 0, %s89
      %s91 = sphi 0, %s89
      %s92 = sphi 0, %s91
      %s106 = sphi 0, %s92
      %s110 = sphi 0, %s110
      %s112 = sphi 0, %s110
      %s113 = sphi 0, %s112
      %s127 = sphi 0, %s113
      %s131 = sphi 0, %s131
      %s133 = sphi 0, %s131
      %s134 = sphi 0, %s133
      %s148 = sphi 0, %s134
      %s152 = sphi 0, %s152
      %s154 = sphi 0, %s152
      %s155 = sphi 0, %s154
      %s169 = sphi 0, %s155
      %s173 = sphi 0, %s173
      %s175 = sphi 0, %s173
      %s176 = sphi 0, %s175
      %s190 = sphi 0, %s176
      %s194 = sphi 0, %s194
      %s196 = sphi 0, %s194
      %s197 = sphi 0, %s196
      %s211 = sphi 0, %s197
      %s215 = sphi 0, %s215
      %s217 = sphi 0, %s215
      %s218 = sphi 0, %s217
      %s232 = sphi 0, %s218
      %s236 = sphi 0, %s236
      %s238 = sphi 0, %s236
      %s239 = sphi 0, %s238
      %s253 = sphi 0, %s239
      %s261 = sphi 0, %s263
      %s264 = sphi 0, %s261
      %s265 = sphi 0, %s264
      %s281 = sphi 0, %s265
    $region4: #{tpu_custom_call.1} parent=1 // loop_header_branch
      %25 = sbr.rel (%p23) target = $region8
    $region5: #{tpu_custom_call.1} parent=1 // loop_body
      %s27 = ssub.s32 %s22, 1
      %s28 = ssub.s32 %s22, 2
      %s35 = sadd.s32 1, %s30
      %p36 = scmp.ge.s32.totalorder %s35, 3
      %s37 = scalar_select %p36, 0, %s35
      %s38 = sadd.s32 1, %s29
      %s39 = scalar_select %p36, %s38, %s29
      %p40 = scmp.ge.s32.totalorder %s39, 1
      %s41 = scalar_select %p40, 0, %s39
      %s42 = ssub.s32 %s29, %s41
      %p43 = scmp.eq.s32.totalorder %s42, 0
      %s45 = sadd.s32 %s44, 1
      %s46 = scalar_select %p43, %s44, %s45
      %p49 = pneg %p43
      %p50 = scmp.eq.s32.totalorder %s22, 2
      %p51 = por %p49, %p50
      %p52 = scmp.ne.s32.totalorder %s44, %s47
      %p53 = scmp.eq.s32.totalorder %s22, 0
      %p54 = por %p52, %p53
      %p55 = scmp.ne.s32.totalorder %s44, %s47
      %p56 = scmp.eq.s32.totalorder %s27, 2
      %p57 = por %p55, %p56
      %p58 = scmp.ne.s32.totalorder %s47, %s48
      %p59 = scmp.eq.s32.totalorder %s27, 0
      %p60 = por %p58, %p59
      %p61 = scmp.ne.s32.totalorder %s47, %s48
      %p62 = scmp.eq.s32.totalorder %s28, 2
      %p63 = por %p61, %p62
      %p65 = scmp.ne.s32.totalorder %s48, %s64
      %p66 = scmp.eq.s32.totalorder %s28, 0
      %p67 = por %p65, %p66
      %s69 = sadd.s32 %s68, 1
      %p72 = scmp.eq.s32.totalorder %s22, 2
      %p73 = scmp.ne.s32.totalorder %s68, %s70
      %p74 = scmp.eq.s32.totalorder %s22, 0
      %p75 = por %p73, %p74
      %p76 = scmp.ne.s32.totalorder %s68, %s70
      %p77 = scmp.eq.s32.totalorder %s27, 2
      %p78 = por %p76, %p77
      %p79 = scmp.ne.s32.totalorder %s70, %s71
      %p80 = scmp.eq.s32.totalorder %s27, 0
      %p81 = por %p79, %p80
      %p82 = scmp.ne.s32.totalorder %s70, %s71
      %p83 = scmp.eq.s32.totalorder %s28, 2
      %p84 = por %p82, %p83
      %p86 = scmp.ne.s32.totalorder %s71, %s85
      %p87 = scmp.eq.s32.totalorder %s28, 0
      %p88 = por %p86, %p87
      %s90 = sadd.s32 %s89, 1
      %p93 = scmp.eq.s32.totalorder %s22, 2
      %p94 = scmp.ne.s32.totalorder %s89, %s91
      %p95 = scmp.eq.s32.totalorder %s22, 0
      %p96 = por %p94, %p95
      %p97 = scmp.ne.s32.totalorder %s89, %s91
      %p98 = scmp.eq.s32.totalorder %s27, 2
      %p99 = por %p97, %p98
      %p100 = scmp.ne.s32.totalorder %s91, %s92
      %p101 = scmp.eq.s32.totalorder %s27, 0
      %p102 = por %p100, %p101
      %p103 = scmp.ne.s32.totalorder %s91, %s92
      %p104 = scmp.eq.s32.totalorder %s28, 2
      %p105 = por %p103, %p104
      %p107 = scmp.ne.s32.totalorder %s92, %s106
      %p108 = scmp.eq.s32.totalorder %s28, 0
      %p109 = por %p107, %p108
      %s111 = sadd.s32 %s110, 1
      %p114 = scmp.eq.s32.totalorder %s22, 2
      %p115 = scmp.ne.s32.totalorder %s110, %s112
      %p116 = scmp.eq.s32.totalorder %s22, 0
      %p117 = por %p115, %p116
      %p118 = scmp.ne.s32.totalorder %s110, %s112
      %p119 = scmp.eq.s32.totalorder %s27, 2
      %p120 = por %p118, %p119
      %p121 = scmp.ne.s32.totalorder %s112, %s113
      %p122 = scmp.eq.s32.totalorder %s27, 0
      %p123 = por %p121, %p122
      %p124 = scmp.ne.s32.totalorder %s112, %s113
      %p125 = scmp.eq.s32.totalorder %s28, 2
      %p126 = por %p124, %p125
      %p128 = scmp.ne.s32.totalorder %s113, %s127
      %p129 = scmp.eq.s32.totalorder %s28, 0
      %p130 = por %p128, %p129
      %s132 = sadd.s32 %s131, 1
      %p135 = scmp.eq.s32.totalorder %s22, 2
      %p136 = scmp.ne.s32.totalorder %s131, %s133
      %p137 = scmp.eq.s32.totalorder %s22, 0
      %p138 = por %p136, %p137
      %p139 = scmp.ne.s32.totalorder %s131, %s133
      %p140 = scmp.eq.s32.totalorder %s27, 2
      %p141 = por %p139, %p140
      %p142 = scmp.ne.s32.totalorder %s133, %s134
      %p143 = scmp.eq.s32.totalorder %s27, 0
      %p144 = por %p142, %p143
      %p145 = scmp.ne.s32.totalorder %s133, %s134
      %p146 = scmp.eq.s32.totalorder %s28, 2
      %p147 = por %p145, %p146
      %p149 = scmp.ne.s32.totalorder %s134, %s148
      %p150 = scmp.eq.s32.totalorder %s28, 0
      %p151 = por %p149, %p150
      %s153 = sadd.s32 %s152, 1
      %p156 = scmp.eq.s32.totalorder %s22, 2
      %p157 = scmp.ne.s32.totalorder %s152, %s154
      %p158 = scmp.eq.s32.totalorder %s22, 0
      %p159 = por %p157, %p158
      %p160 = scmp.ne.s32.totalorder %s152, %s154
      %p161 = scmp.eq.s32.totalorder %s27, 2
      %p162 = por %p160, %p161
      %p163 = scmp.ne.s32.totalorder %s154, %s155
      %p164 = scmp.eq.s32.totalorder %s27, 0
      %p165 = por %p163, %p164
      %p166 = scmp.ne.s32.totalorder %s154, %s155
      %p167 = scmp.eq.s32.totalorder %s28, 2
      %p168 = por %p166, %p167
      %p170 = scmp.ne.s32.totalorder %s155, %s169
      %p171 = scmp.eq.s32.totalorder %s28, 0
      %p172 = por %p170, %p171
      %s174 = sadd.s32 %s173, 1
      %p177 = scmp.eq.s32.totalorder %s22, 2
      %p178 = scmp.ne.s32.totalorder %s173, %s175
      %p179 = scmp.eq.s32.totalorder %s22, 0
      %p180 = por %p178, %p179
      %p181 = scmp.ne.s32.totalorder %s173, %s175
      %p182 = scmp.eq.s32.totalorder %s27, 2
      %p183 = por %p181, %p182
      %p184 = scmp.ne.s32.totalorder %s175, %s176
      %p185 = scmp.eq.s32.totalorder %s27, 0
      %p186 = por %p184, %p185
      %p187 = scmp.ne.s32.totalorder %s175, %s176
      %p188 = scmp.eq.s32.totalorder %s28, 2
      %p189 = por %p187, %p188
      %p191 = scmp.ne.s32.totalorder %s176, %s190
      %p192 = scmp.eq.s32.totalorder %s28, 0
      %p193 = por %p191, %p192
      %s195 = sadd.s32 %s194, 1
      %p198 = scmp.eq.s32.totalorder %s22, 2
      %p199 = scmp.ne.s32.totalorder %s194, %s196
      %p200 = scmp.eq.s32.totalorder %s22, 0
      %p201 = por %p199, %p200
      %p202 = scmp.ne.s32.totalorder %s194, %s196
      %p203 = scmp.eq.s32.totalorder %s27, 2
      %p204 = por %p202, %p203
      %p205 = scmp.ne.s32.totalorder %s196, %s197
      %p206 = scmp.eq.s32.totalorder %s27, 0
      %p207 = por %p205, %p206
      %p208 = scmp.ne.s32.totalorder %s196, %s197
      %p209 = scmp.eq.s32.totalorder %s28, 2
      %p210 = por %p208, %p209
      %p212 = scmp.ne.s32.totalorder %s197, %s211
      %p213 = scmp.eq.s32.totalorder %s28, 0
      %p214 = por %p212, %p213
      %s216 = sadd.s32 %s215, 1
      %p219 = scmp.eq.s32.totalorder %s22, 2
      %p220 = scmp.ne.s32.totalorder %s215, %s217
      %p221 = scmp.eq.s32.totalorder %s22, 0
      %p222 = por %p220, %p221
      %p223 = scmp.ne.s32.totalorder %s215, %s217
      %p224 = scmp.eq.s32.totalorder %s27, 2
      %p225 = por %p223, %p224
      %p226 = scmp.ne.s32.totalorder %s217, %s218
      %p227 = scmp.eq.s32.totalorder %s27, 0
      %p228 = por %p226, %p227
      %p229 = scmp.ne.s32.totalorder %s217, %s218
      %p230 = scmp.eq.s32.totalorder %s28, 2
      %p231 = por %p229, %p230
      %p233 = scmp.ne.s32.totalorder %s218, %s232
      %p234 = scmp.eq.s32.totalorder %s28, 0
      %p235 = por %p233, %p234
      %s237 = sadd.s32 %s236, 1
      %p240 = scmp.eq.s32.totalorder %s22, 2
      %p241 = scmp.ne.s32.totalorder %s236, %s238
      %p242 = scmp.eq.s32.totalorder %s22, 0
      %p243 = por %p241, %p242
      %p244 = scmp.ne.s32.totalorder %s236, %s238
      %p245 = scmp.eq.s32.totalorder %s27, 2
      %p246 = por %p244, %p245
      %p247 = scmp.ne.s32.totalorder %s238, %s239
      %p248 = scmp.eq.s32.totalorder %s27, 0
      %p249 = por %p247, %p248
      %p250 = scmp.ne.s32.totalorder %s238, %s239
      %p251 = scmp.eq.s32.totalorder %s28, 2
      %p252 = por %p250, %p251
      %p254 = scmp.ne.s32.totalorder %s239, %s253
      %p255 = scmp.eq.s32.totalorder %s28, 0
      %p256 = por %p254, %p255
      %s257 = ssub.s32 %s30, %s37
      %s258 = ssub.s32 %s29, %s41
      %s259 = sor.u32 %s257, %s258
      %p260 = scmp.eq.s32.totalorder %s259, 0
      %s262 = sadd.s32 %s261, 1
      %s263 = scalar_select %p260, %s261, %s262
      %p266 = pneg %p260
      %p267 = scmp.eq.s32.totalorder %s22, 2
      %p268 = por %p266, %p267
      %p269 = scmp.ne.s32.totalorder %s261, %s264
      %p270 = scmp.eq.s32.totalorder %s22, 0
      %p271 = por %p269, %p270
      %p272 = scmp.ne.s32.totalorder %s261, %s264
      %p273 = scmp.eq.s32.totalorder %s27, 2
      %p274 = por %p272, %p273
      %p275 = scmp.ne.s32.totalorder %s264, %s265
      %p276 = scmp.eq.s32.totalorder %s27, 0
      %p277 = por %p275, %p276
      %p278 = scmp.ne.s32.totalorder %s264, %s265
      %p279 = scmp.eq.s32.totalorder %s28, 2
      %p280 = por %p278, %p279
      %p282 = scmp.ne.s32.totalorder %s265, %s281
      %p283 = scmp.eq.s32.totalorder %s28, 0
      %p284 = por %p282, %p283
      %p285 = scmp.le.s32.totalorder 1, %s22
      %p286 = scmp.lt.s32.totalorder %s22, 4
      %p287 = pnand %p285, %p286
      %p288 = pneg %p287
      // Predicated region
      $region9: #{tpu_custom_call.1} parent=5 // pred_check
        _
      $region10: #{tpu_custom_call.1} parent=5 // pred_check_branch
        %290 = sbr.rel (%p287) target = $region12
      $region11: #{tpu_custom_call.1} parent=5 // pred_region
        %s291 = ssub.s32 %s22, 1
        // Predicated region
        $region13: #{tpu_custom_call.1} parent=11 // pred_check
          %p292 = pneg %p60
        $region14: #{tpu_custom_call.1} parent=11 // pred_check_branch
          %294 = sbr.rel (%p292) target = $region16
        $region15: #{tpu_custom_call.1} parent=11 // pred_region
          %s295 = smul.u32 2, %s31
          %s297 = ssub.s32 256, 256
          %298 = vsyncadd [#allocation3], %s297
          %s299 = smul.addr %s295, 128
          %s300 = scalar_lea.hbm %s0, %s299
          %s301 = sshll.u32 [#allocation2], 4
          %s302 = int_to_ptr.vmem [resolvable:$true] %s301
          %307 = dma.hbm_to_vmem [thread:$0]  %s300, 256, %s302, [#allocation3], 128, 128, 8
        $region16: #{tpu_custom_call.1} parent=11 // pred_fallthru
          _
        // Predicated region
        $region17: #{tpu_custom_call.1} parent=11 // pred_check
          %p308 = pneg %p81
        $region18: #{tpu_custom_call.1} parent=11 // pred_check_branch
          %310 = sbr.rel (%p308) target = $region20
        $region19: #{tpu_custom_call.1} parent=11 // pred_region
          %s312 = ssub.s32 64, 64
          %313 = vsyncadd [#allocation6], %s312
          %s315 = sshll.u32 [#allocation5], 4
          %s316 = int_to_ptr.vmem [resolvable:$true] %s315
          %318 = dma.hbm_to_vmem [thread:$0]  %s1, 64, %s316, [#allocation6]
        $region20: #{tpu_custom_call.1} parent=11 // pred_fallthru
          _
        // Predicated region
        $region21: #{tpu_custom_call.1} parent=11 // pred_check
          %p319 = pneg %p102
        $region22: #{tpu_custom_call.1} parent=11 // pred_check_branch
          %321 = sbr.rel (%p319) target = $region24
        $region23: #{tpu_custom_call.1} parent=11 // pred_region
          _
        $region24: #{tpu_custom_call.1} parent=11 // pred_fallthru
          _
        // Predicated region
        $region25: #{tpu_custom_call.1} parent=11 // pred_check
          %p322 = pneg %p123
        $region26: #{tpu_custom_call.1} parent=11 // pred_check_branch
          %324 = sbr.rel (%p322) target = $region28
        $region27: #{tpu_custom_call.1} parent=11 // pred_region
          _
        $region28: #{tpu_custom_call.1} parent=11 // pred_fallthru
          _
        // Predicated region
        $region29: #{tpu_custom_call.1} parent=11 // pred_check
          %p325 = pneg %p144
        $region30: #{tpu_custom_call.1} parent=11 // pred_check_branch
          %327 = sbr.rel (%p325) target = $region32
        $region31: #{tpu_custom_call.1} parent=11 // pred_region
          %s329 = ssub.s32 2048, 2048
          %330 = vsyncadd [#allocation6], %s329
          %s331 = sshll.u32 [#allocation7], 4
          %s332 = int_to_ptr.vmem [resolvable:$true] %s331
          %337 = dma.hbm_to_vmem [thread:$0]  %s4, 2048, %s332, [#allocation6], 128, 128, 8
        $region32: #{tpu_custom_call.1} parent=11 // pred_fallthru
          _
        // Predicated region
        $region33: #{tpu_custom_call.1} parent=11 // pred_check
          %p338 = pneg %p165
        $region34: #{tpu_custom_call.1} parent=11 // pred_check_branch
          %340 = sbr.rel (%p338) target = $region36
        $region35: #{tpu_custom_call.1} parent=11 // pred_region
          _
        $region36: #{tpu_custom_call.1} parent=11 // pred_fallthru
          _
        // Predicated region
        $region37: #{tpu_custom_call.1} parent=11 // pred_check
          %p341 = pneg %p186
        $region38: #{tpu_custom_call.1} parent=11 // pred_check_branch
          %343 = sbr.rel (%p341) target = $region40
        $region39: #{tpu_custom_call.1} parent=11 // pred_region
          %s345 = ssub.s32 2048, 2048
          %346 = vsyncadd [#allocation9], %s345
          %s347 = sshll.u32 [#allocation8], 4
          %s348 = int_to_ptr.vmem [resolvable:$true] %s347
          %353 = dma.hbm_to_vmem [thread:$0]  %s6, 2048, %s348, [#allocation9], 128, 128, 8
        $region40: #{tpu_custom_call.1} parent=11 // pred_fallthru
          _
        // Predicated region
        $region41: #{tpu_custom_call.1} parent=11 // pred_check
          %p354 = pneg %p207
        $region42: #{tpu_custom_call.1} parent=11 // pred_check_branch
          %356 = sbr.rel (%p354) target = $region44
        $region43: #{tpu_custom_call.1} parent=11 // pred_region
          _
        $region44: #{tpu_custom_call.1} parent=11 // pred_fallthru
          _
        // Predicated region
        $region45: #{tpu_custom_call.1} parent=11 // pred_check
          %p357 = pneg %p228
        $region46: #{tpu_custom_call.1} parent=11 // pred_check_branch
          %359 = sbr.rel (%p357) target = $region48
        $region47: #{tpu_custom_call.1} parent=11 // pred_region
          %s361 = ssub.s32 2048, 2048
          %362 = vsyncadd [#allocation9], %s361
          %s363 = sshll.u32 [#allocation10], 4
          %s364 = int_to_ptr.vmem [resolvable:$true] %s363
          %369 = dma.hbm_to_vmem [thread:$0]  %s8, 2048, %s364, [#allocation9], 128, 128, 8
        $region48: #{tpu_custom_call.1} parent=11 // pred_fallthru
          _
        // Predicated region
        $region49: #{tpu_custom_call.1} parent=11 // pred_check
          %p370 = pneg %p249
        $region50: #{tpu_custom_call.1} parent=11 // pred_check_branch
          %372 = sbr.rel (%p370) target = $region52
        $region51: #{tpu_custom_call.1} parent=11 // pred_region
          _
        $region52: #{tpu_custom_call.1} parent=11 // pred_fallthru
          _
      $region12: #{tpu_custom_call.1} parent=5 // pred_fallthru
        _
      %p373 = scmp.lt.s32.totalorder %s22, 3
      // Predicated region
      $region53: #{tpu_custom_call.1} parent=5 // pred_check
        %p374 = pneg %p373
      $region54: #{tpu_custom_call.1} parent=5 // pred_check_branch
        %376 = sbr.rel (%p374) target = $region56
      $region55: #{tpu_custom_call.1} parent=5 // pred_region
        _
      $region56: #{tpu_custom_call.1} parent=5 // pred_fallthru
        _
      %p377 = scmp.le.s32.totalorder 1, %s22
      %p378 = scmp.lt.s32.totalorder %s22, 4
      %p379 = pnand %p377, %p378
      %p380 = pneg %p379
      // Predicated region
      $region57: #{tpu_custom_call.1} parent=5 // pred_check
        _
      $region58: #{tpu_custom_call.1} parent=5 // pred_check_branch
        %382 = sbr.rel (%p379) target = $region60
      $region59: #{tpu_custom_call.1} parent=5 // pred_region
        %s383 = ssub.s32 %s22, 1
        // Predicated region
        $region61: #{tpu_custom_call.1} parent=59 // pred_check
          %p384 = pneg %p60
        $region62: #{tpu_custom_call.1} parent=59 // pred_check_branch
          %386 = sbr.rel (%p384) target = $region64
        $region63: #{tpu_custom_call.1} parent=59 // pred_region
          %387 = dma.done [#allocation3], 256
        $region64: #{tpu_custom_call.1} parent=59 // pred_fallthru
          _
        // Predicated region
        $region65: #{tpu_custom_call.1} parent=59 // pred_check
          %p388 = pneg %p81
        $region66: #{tpu_custom_call.1} parent=59 // pred_check_branch
          %390 = sbr.rel (%p388) target = $region68
        $region67: #{tpu_custom_call.1} parent=59 // pred_region
          %391 = dma.done [#allocation6], 64
        $region68: #{tpu_custom_call.1} parent=59 // pred_fallthru
          _
        // Predicated region
        $region69: #{tpu_custom_call.1} parent=59 // pred_check
          %p392 = pneg %p144
        $region70: #{tpu_custom_call.1} parent=59 // pred_check_branch
          %394 = sbr.rel (%p392) target = $region72
        $region71: #{tpu_custom_call.1} parent=59 // pred_region
          %395 = dma.done [#allocation6], 2048
        $region72: #{tpu_custom_call.1} parent=59 // pred_fallthru
          _
        // Predicated region
        $region73: #{tpu_custom_call.1} parent=59 // pred_check
          %p396 = pneg %p186
        $region74: #{tpu_custom_call.1} parent=59 // pred_check_branch
          %398 = sbr.rel (%p396) target = $region76
        $region75: #{tpu_custom_call.1} parent=59 // pred_region
          %399 = dma.done [#allocation9], 2048
        $region76: #{tpu_custom_call.1} parent=59 // pred_fallthru
          _
        // Predicated region
        $region77: #{tpu_custom_call.1} parent=59 // pred_check
          %p400 = pneg %p228
        $region78: #{tpu_custom_call.1} parent=59 // pred_check_branch
          %402 = sbr.rel (%p400) target = $region80
        $region79: #{tpu_custom_call.1} parent=59 // pred_region
          %403 = dma.done [#allocation9], 2048
        $region80: #{tpu_custom_call.1} parent=59 // pred_fallthru
          _
        %p404 = pneg %p60
        %p405 = pneg %p57
        %p406 = pneg %p81
        %p407 = pneg %p78
        %p408 = pneg %p102
        %p409 = pneg %p99
        %p410 = pneg %p123
        %p411 = pneg %p120
        %p412 = pneg %p144
        %p413 = pneg %p141
        %p414 = pneg %p165
        %p415 = pneg %p162
        %p416 = pneg %p186
        %p417 = pneg %p183
        %p418 = pneg %p207
        %p419 = pneg %p204
        %p420 = pneg %p228
        %p421 = pneg %p225
        %p422 = pneg %p249
        %p423 = pneg %p246
        %p424 = pneg %p277
        %p425 = pneg %p274
        %s426 = sand.u32 %s264, 1
        %s427 = scalar_lea.sflag [#allocation4], %s426
        %s428 = sand.u32 %s264, 1
        %s429 = smul.addr %s428, 16
        %s430 = scalar_lea.vmem [#allocation11], %s429
        %s431 = smul.u32 2, %s31
        %s432 = smul.u32 2, %s31
        %v433 = vld [vmem:[#allocation2] sm:$0xff]
        %v434 = vld [vmem:[#allocation2 + $0x8] sm:$0xff]
        %s435 = scalar_lea.vmem [#allocation5], %s32
        %v436 = vld [vmem:[%s435] sm:$0x1]
        %v437 = vlaneseq
        %v438 = vshrl.u32 %v437, 7
        %v439 = vsub.s32 0, %v438
        %v440 = vrot.slane %v436, %v439
        %v441 = vadd.f32 %v433, %v440
        %v442 = vadd.f32 %v434, %v440
        %443 = vadd.xlane.f32.xlu0 %v441
        %v444 = vpop.xlane.xlu0 %443
        %445 = vadd.xlane.f32.xlu0 %v442
        %v446 = vpop.xlane.xlu0 %445
        %v447 = vmul.f32 %v444, 0.03125
        %v448 = vmul.f32 %v446, 0.03125
        %v449 = vsub.f32 %v441, %v447
        %v450 = vsub.f32 %v442, %v448
        %v451 = vlaneseq
        %v452 = vand.u32 %v451, 127
        %vm453 = vcmp.lt.s32.totalorder %v452, 32
        %v454 = vsel %vm453, %v449, 0.0
        %v455 = vsel %vm453, %v450, 0.0
        %v456 = vmul.f32 %v454, %v454
        %v457 = vmul.f32 %v455, %v455
        %458 = vadd.xlane.f32.xlu0 %v456
        %v459 = vpop.xlane.xlu0 %458
        %460 = vadd.xlane.f32.xlu0 %v457
        %v461 = vpop.xlane.xlu0 %460
        %v462 = vmul.f32 %v459, 0.03125
        %v463 = vmul.f32 %v461, 0.03125
        %v464 = vadd.f32 %v462, 1e-06
        %v465 = vadd.f32 %v463, 1e-06
        %v466 = vrsqrt.pop %v464
        %v467 = vrsqrt.pop %v465
        %v468 = vmul.f32 %v454, %v466
        %v469 = vmul.f32 %v455, %v467
        %v470 = vld [vmem:[%s2] sm:$0x1]
        %v472 = vlaneseq
        %v473 = vshrl.u32 %v472, 7
        %v474 = vsub.s32 0, %v473
        %v475 = vrot.slane %v470, %v474
        %v477 = vmul.f32 %v468, %v475
        %v478 = vmul.f32 %v469, %v475
        %v479 = vld [vmem:[%s3] sm:$0x1]
        %v481 = vlaneseq
        %v482 = vshrl.u32 %v481, 7
        %v483 = vsub.s32 0, %v482
        %v484 = vrot.slane %v479, %v483
        %v486 = vadd.f32 %v477, %v484
        %v487 = vadd.f32 %v478, %v484
        %v488 = vld [vmem:[#allocation7] sm:$0xff]
        %v489 = vld [vmem:[#allocation7 + $0x8] sm:$0xff]
        %v490 = vld [vmem:[#allocation7 + $0x10] sm:$0xff]
        %v491 = vld [vmem:[#allocation7 + $0x18] sm:$0xff]
        %v492 = vld [vmem:[#allocation7 + $0x20] sm:$0xff]
        %v493 = vld [vmem:[#allocation7 + $0x28] sm:$0xff]
        %v494 = vld [vmem:[#allocation7 + $0x30] sm:$0xff]
        %v495 = vld [vmem:[#allocation7 + $0x38] sm:$0xff]
        %v496 = vld [vmem:[#allocation7 + $0x40] sm:$0xff]
        %v497 = vld [vmem:[#allocation7 + $0x48] sm:$0xff]
        %v498 = vld [vmem:[#allocation7 + $0x50] sm:$0xff]
        %v499 = vld [vmem:[#allocation7 + $0x58] sm:$0xff]
        %v500 = vld [vmem:[#allocation7 + $0x60] sm:$0xff]
        %v501 = vld [vmem:[#allocation7 + $0x68] sm:$0xff]
        %v502 = vld [vmem:[#allocation7 + $0x70] sm:$0xff]
        %v503 = vld [vmem:[#allocation7 + $0x78] sm:$0xff]
        %v504 = vld [vmem:[%s5] sm:$0x1]
        %v506 = vlaneseq
        %v507 = vshrl.u32 %v506, 7
        %v508 = vsub.s32 0, %v507
        %v509 = vrot.slane %v504, %v508
        %511 = vmatprep.subr.mxu0 0.0
        %512 = vmatpush1.msra.mxu0 %v488
        %513 = vmatprep.subr.mxu0 0.0
        %514 = vmatpush1.msra.mxu0 %v489
        %515 = vmatprep.subr.mxu0 0.0
        %516 = vmatpush1.msra.mxu0 %v490
        %517 = vmatprep.subr.mxu0 0.0
        %518 = vmatpush1.msra.mxu0 %v491
        %519 = vmatprep.subr.mxu0 0.0
        %520 = vmatpush1.msra.mxu0 %v492
        %521 = vmatprep.subr.mxu0 0.0
        %522 = vmatpush1.msra.mxu0 %v493
        %523 = vmatprep.subr.mxu0 0.0
        %524 = vmatpush1.msra.mxu0 %v494
        %525 = vmatprep.subr.mxu0 0.0
        %526 = vmatpush1.msra.mxu0 %v495
        %527 = vmatprep.subr.mxu0 0.0
        %528 = vmatpush1.msra.mxu0 %v496
        %529 = vmatprep.subr.mxu0 0.0
        %530 = vmatpush1.msra.mxu0 %v497
        %531 = vmatprep.subr.mxu0 0.0
        %532 = vmatpush1.msra.mxu0 %v498
        %533 = vmatprep.subr.mxu0 0.0
        %534 = vmatpush1.msra.mxu0 %v499
        %535 = vmatprep.subr.mxu0 0.0
        %536 = vmatpush1.msra.mxu0 %v500
        %537 = vmatprep.subr.mxu0 0.0
        %538 = vmatpush1.msra.mxu0 %v501
        %539 = vmatprep.subr.mxu0 0.0
        %540 = vmatpush1.msra.mxu0 %v502
        %541 = vmatprep.subr.mxu0 0.0
        %542 = vmatpush1.msra.mxu0 %v503
        %543 = vmatprep.subr.mxu0 0.0
        %544 = vmatpush1.msra.mxu0 0.0
        %545 = vmatprep.subr.mxu0 0.0
        %546 = vmatpush1.msra.mxu0 0.0
        %547 = vmatprep.subr.mxu0 0.0
        %548 = vmatpush1.msra.mxu0 0.0
        %549 = vmatprep.subr.mxu0 0.0
        %550 = vmatpush1.msra.mxu0 0.0
        %551 = vmatprep.subr.mxu0 0.0
        %552 = vmatpush1.msra.mxu0 0.0
        %553 = vmatprep.subr.mxu0 0.0
        %554 = vmatpush1.msra.mxu0 0.0
        %555 = vmatprep.subr.mxu0 0.0
        %556 = vmatpush1.msra.mxu0 0.0
        %557 = vmatprep.subr.mxu0 0.0
        %558 = vmatpush1.msra.mxu0 0.0
        %559 = vmatprep.subr.mxu0 0.0
        %560 = vmatpush1.msra.mxu0 0.0
        %561 = vmatprep.subr.mxu0 0.0
        %562 = vmatpush1.msra.mxu0 0.0
        %563 = vmatprep.subr.mxu0 0.0
        %564 = vmatpush1.msra.mxu0 0.0
        %565 = vmatprep.subr.mxu0 0.0
        %566 = vmatpush1.msra.mxu0 0.0
        %567 = vmatprep.subr.mxu0 0.0
        %568 = vmatpush1.msra.mxu0 0.0
        %569 = vmatprep.subr.mxu0 0.0
        %570 = vmatpush1.msra.mxu0 0.0
        %571 = vmatprep.subr.mxu0 0.0
        %572 = vmatpush1.msra.mxu0 0.0
        %573 = vmatprep.subr.mxu0 0.0
        %574 = vmatpush1.msra.mxu0 0.0
        %575 = vmatprep.mubr.f32.mxu0 0.0
        %576 = vmatmul.mubr.f32.gmra.mrb[0].mxu0 %v486
        %v577 = vpop.f32.mrb[0].mxu0
        %v578 = vadd.f32 %v509, %v577
        %v579 = vpop.f32.mrb[0].mxu0
        %580 = vmatprep.mubr.f32.mxu0 0.0
        %581 = vmatmul.mubr.f32.gmra.mrb[0].mxu0 %v487
        %v582 = vpop.f32.mrb[0].mxu0
        %v583 = vadd.f32 %v509, %v582
        %v584 = vpop.f32.mrb[0].mxu0
        %585 = vdwg.mxu0
        %v586 = vmax.f32 %v578, 0.0
        %v587 = vmax.f32 %v583, 0.0
        %v588 = vld [vmem:[#allocation8] sm:$0xff]
        %v589 = vld [vmem:[#allocation8 + $0x8] sm:$0xff]
        %v590 = vld [vmem:[#allocation8 + $0x10] sm:$0xff]
        %v591 = vld [vmem:[#allocation8 + $0x18] sm:$0xff]
        %v592 = vld [vmem:[#allocation8 + $0x20] sm:$0xff]
        %v593 = vld [vmem:[#allocation8 + $0x28] sm:$0xff]
        %v594 = vld [vmem:[#allocation8 + $0x30] sm:$0xff]
        %v595 = vld [vmem:[#allocation8 + $0x38] sm:$0xff]
        %v596 = vld [vmem:[#allocation8 + $0x40] sm:$0xff]
        %v597 = vld [vmem:[#allocation8 + $0x48] sm:$0xff]
        %v598 = vld [vmem:[#allocation8 + $0x50] sm:$0xff]
        %v599 = vld [vmem:[#allocation8 + $0x58] sm:$0xff]
        %v600 = vld [vmem:[#allocation8 + $0x60] sm:$0xff]
        %v601 = vld [vmem:[#allocation8 + $0x68] sm:$0xff]
        %v602 = vld [vmem:[#allocation8 + $0x70] sm:$0xff]
        %v603 = vld [vmem:[#allocation8 + $0x78] sm:$0xff]
        %v604 = vld [vmem:[%s7] sm:$0x1]
        %v606 = vlaneseq
        %v607 = vshrl.u32 %v606, 7
        %v608 = vsub.s32 0, %v607
        %v609 = vrot.slane %v604, %v608
        %611 = vmatprep.subr.mxu0 0.0
        %612 = vmatpush1.msra.mxu0 %v588
        %613 = vmatprep.subr.mxu0 0.0
        %614 = vmatpush1.msra.mxu0 %v589
        %615 = vmatprep.subr.mxu0 0.0
        %616 = vmatpush1.msra.mxu0 %v590
        %617 = vmatprep.subr.mxu0 0.0
        %618 = vmatpush1.msra.mxu0 %v591
        %619 = vmatprep.subr.mxu0 0.0
        %620 = vmatpush1.msra.mxu0 %v592
        %621 = vmatprep.subr.mxu0 0.0
        %622 = vmatpush1.msra.mxu0 %v593
        %623 = vmatprep.subr.mxu0 0.0
        %624 = vmatpush1.msra.mxu0 %v594
        %625 = vmatprep.subr.mxu0 0.0
        %626 = vmatpush1.msra.mxu0 %v595
        %627 = vmatprep.subr.mxu0 0.0
        %628 = vmatpush1.msra.mxu0 %v596
        %629 = vmatprep.subr.mxu0 0.0
        %630 = vmatpush1.msra.mxu0 %v597
        %631 = vmatprep.subr.mxu0 0.0
        %632 = vmatpush1.msra.mxu0 %v598
        %633 = vmatprep.subr.mxu0 0.0
        %634 = vmatpush1.msra.mxu0 %v599
        %635 = vmatprep.subr.mxu0 0.0
        %636 = vmatpush1.msra.mxu0 %v600
        %637 = vmatprep.subr.mxu0 0.0
        %638 = vmatpush1.msra.mxu0 %v601
        %639 = vmatprep.subr.mxu0 0.0
        %640 = vmatpush1.msra.mxu0 %v602
        %641 = vmatprep.subr.mxu0 0.0
        %642 = vmatpush1.msra.mxu0 %v603
        %643 = vmatprep.subr.mxu0 0.0
        %644 = vmatpush1.msra.mxu0 0.0
        %645 = vmatprep.subr.mxu0 0.0
        %646 = vmatpush1.msra.mxu0 0.0
        %647 = vmatprep.subr.mxu0 0.0
        %648 = vmatpush1.msra.mxu0 0.0
        %649 = vmatprep.subr.mxu0 0.0
        %650 = vmatpush1.msra.mxu0 0.0
        %651 = vmatprep.subr.mxu0 0.0
        %652 = vmatpush1.msra.mxu0 0.0
        %653 = vmatprep.subr.mxu0 0.0
        %654 = vmatpush1.msra.mxu0 0.0
        %655 = vmatprep.subr.mxu0 0.0
        %656 = vmatpush1.msra.mxu0 0.0
        %657 = vmatprep.subr.mxu0 0.0
        %658 = vmatpush1.msra.mxu0 0.0
        %659 = vmatprep.subr.mxu0 0.0
        %660 = vmatpush1.msra.mxu0 0.0
        %661 = vmatprep.subr.mxu0 0.0
        %662 = vmatpush1.msra.mxu0 0.0
        %663 = vmatprep.subr.mxu0 0.0
        %664 = vmatpush1.msra.mxu0 0.0
        %665 = vmatprep.subr.mxu0 0.0
        %666 = vmatpush1.msra.mxu0 0.0
        %667 = vmatprep.subr.mxu0 0.0
        %668 = vmatpush1.msra.mxu0 0.0
        %669 = vmatprep.subr.mxu0 0.0
        %670 = vmatpush1.msra.mxu0 0.0
        %671 = vmatprep.subr.mxu0 0.0
        %672 = vmatpush1.msra.mxu0 0.0
        %673 = vmatprep.subr.mxu0 0.0
        %674 = vmatpush1.msra.mxu0 0.0
        %675 = vmatprep.mubr.f32.mxu0 0.0
        %676 = vmatmul.mubr.f32.gmra.mrb[0].mxu0 %v586
        %v677 = vpop.f32.mrb[0].mxu0
        %v678 = vadd.f32 %v609, %v677
        %v679 = vpop.f32.mrb[0].mxu0
        %680 = vmatprep.mubr.f32.mxu0 0.0
        %681 = vmatmul.mubr.f32.gmra.mrb[0].mxu0 %v587
        %v682 = vpop.f32.mrb[0].mxu0
        %v683 = vadd.f32 %v609, %v682
        %v684 = vpop.f32.mrb[0].mxu0
        %685 = vdwg.mxu0
        %v686 = vmax.f32 %v678, 0.0
        %v687 = vmax.f32 %v683, 0.0
        %v688 = vld [vmem:[#allocation10] sm:$0xff]
        %v689 = vld [vmem:[#allocation10 + $0x8] sm:$0xff]
        %v690 = vld [vmem:[#allocation10 + $0x10] sm:$0xff]
        %v691 = vld [vmem:[#allocation10 + $0x18] sm:$0xff]
        %v692 = vld [vmem:[#allocation10 + $0x20] sm:$0xff]
        %v693 = vld [vmem:[#allocation10 + $0x28] sm:$0xff]
        %v694 = vld [vmem:[#allocation10 + $0x30] sm:$0xff]
        %v695 = vld [vmem:[#allocation10 + $0x38] sm:$0xff]
        %v696 = vld [vmem:[#allocation10 + $0x40] sm:$0xff]
        %v697 = vld [vmem:[#allocation10 + $0x48] sm:$0xff]
        %v698 = vld [vmem:[#allocation10 + $0x50] sm:$0xff]
        %v699 = vld [vmem:[#allocation10 + $0x58] sm:$0xff]
        %v700 = vld [vmem:[#allocation10 + $0x60] sm:$0xff]
        %v701 = vld [vmem:[#allocation10 + $0x68] sm:$0xff]
        %v702 = vld [vmem:[#allocation10 + $0x70] sm:$0xff]
        %v703 = vld [vmem:[#allocation10 + $0x78] sm:$0xff]
        %v704 = vld [vmem:[%s9] sm:$0x1]
        %v706 = vlaneseq
        %v707 = vshrl.u32 %v706, 7
        %v708 = vsub.s32 0, %v707
        %v709 = vrot.slane %v704, %v708
        %711 = vmatprep.subr.mxu0 0.0
        %712 = vmatpush1.msra.mxu0 %v688
        %713 = vmatprep.subr.mxu0 0.0
        %714 = vmatpush1.msra.mxu0 %v689
        %715 = vmatprep.subr.mxu0 0.0
        %716 = vmatpush1.msra.mxu0 %v690
        %717 = vmatprep.subr.mxu0 0.0
        %718 = vmatpush1.msra.mxu0 %v691
        %719 = vmatprep.subr.mxu0 0.0
        %720 = vmatpush1.msra.mxu0 %v692
        %721 = vmatprep.subr.mxu0 0.0
        %722 = vmatpush1.msra.mxu0 %v693
        %723 = vmatprep.subr.mxu0 0.0
        %724 = vmatpush1.msra.mxu0 %v694
        %725 = vmatprep.subr.mxu0 0.0
        %726 = vmatpush1.msra.mxu0 %v695
        %727 = vmatprep.subr.mxu0 0.0
        %728 = vmatpush1.msra.mxu0 %v696
        %729 = vmatprep.subr.mxu0 0.0
        %730 = vmatpush1.msra.mxu0 %v697
        %731 = vmatprep.subr.mxu0 0.0
        %732 = vmatpush1.msra.mxu0 %v698
        %733 = vmatprep.subr.mxu0 0.0
        %734 = vmatpush1.msra.mxu0 %v699
        %735 = vmatprep.subr.mxu0 0.0
        %736 = vmatpush1.msra.mxu0 %v700
        %737 = vmatprep.subr.mxu0 0.0
        %738 = vmatpush1.msra.mxu0 %v701
        %739 = vmatprep.subr.mxu0 0.0
        %740 = vmatpush1.msra.mxu0 %v702
        %741 = vmatprep.subr.mxu0 0.0
        %742 = vmatpush1.msra.mxu0 %v703
        %743 = vmatprep.subr.mxu0 0.0
        %744 = vmatpush1.msra.mxu0 0.0
        %745 = vmatprep.subr.mxu0 0.0
        %746 = vmatpush1.msra.mxu0 0.0
        %747 = vmatprep.subr.mxu0 0.0
        %748 = vmatpush1.msra.mxu0 0.0
        %749 = vmatprep.subr.mxu0 0.0
        %750 = vmatpush1.msra.mxu0 0.0
        %751 = vmatprep.subr.mxu0 0.0
        %752 = vmatpush1.msra.mxu0 0.0
        %753 = vmatprep.subr.mxu0 0.0
        %754 = vmatpush1.msra.mxu0 0.0
        %755 = vmatprep.subr.mxu0 0.0
        %756 = vmatpush1.msra.mxu0 0.0
        %757 = vmatprep.subr.mxu0 0.0
        %758 = vmatpush1.msra.mxu0 0.0
        %759 = vmatprep.subr.mxu0 0.0
        %760 = vmatpush1.msra.mxu0 0.0
        %761 = vmatprep.subr.mxu0 0.0
        %762 = vmatpush1.msra.mxu0 0.0
        %763 = vmatprep.subr.mxu0 0.0
        %764 = vmatpush1.msra.mxu0 0.0
        %765 = vmatprep.subr.mxu0 0.0
        %766 = vmatpush1.msra.mxu0 0.0
        %767 = vmatprep.subr.mxu0 0.0
        %768 = vmatpush1.msra.mxu0 0.0
        %769 = vmatprep.subr.mxu0 0.0
        %770 = vmatpush1.msra.mxu0 0.0
        %771 = vmatprep.subr.mxu0 0.0
        %772 = vmatpush1.msra.mxu0 0.0
        %773 = vmatprep.subr.mxu0 0.0
        %774 = vmatpush1.msra.mxu0 0.0
        %775 = vmatprep.mubr.f32.mxu0 0.0
        %776 = vmatmul.mubr.f32.gmra.mrb[0].mxu0 %v686
        %v777 = vpop.f32.mrb[0].mxu0
        %v778 = vadd.f32 %v709, %v777
        %v779 = vpop.f32.mrb[0].mxu0
        %780 = vmatprep.mubr.f32.mxu0 0.0
        %781 = vmatmul.mubr.f32.gmra.mrb[0].mxu0 %v687
        %v782 = vpop.f32.mrb[0].mxu0
        %v783 = vadd.f32 %v709, %v782
        %v784 = vpop.f32.mrb[0].mxu0
        %785 = vdwg.mxu0
        %786 = vst [vmem:[%s430] sm:$0xff] %v778
        %787 = vst [vmem:[%s430 + $0x8] sm:$0xff] %v783
        %s788 = sand.u32 %s264, 1
        %s789 = scalar_lea.sflag [#allocation4], %s788
        %s790 = sand.u32 %s264, 1
        %s791 = smul.addr %s790, 16
        %s792 = scalar_lea.vmem [#allocation11], %s791
        // Predicated region
        $region81: #{tpu_custom_call.1} parent=59 // pred_check
          %p793 = pneg %p274
        $region82: #{tpu_custom_call.1} parent=59 // pred_check_branch
          %795 = sbr.rel (%p793) target = $region84
        $region83: #{tpu_custom_call.1} parent=59 // pred_region
          %s796 = smul.u32 2, %s31
          %s798 = ssub.s32 256, 256
          %799 = vsyncadd %s789, %s798
          %s800 = smul.addr %s32, 2
          %s801 = sadd.s32 %s796, %s800
          %s802 = smul.addr %s801, 128
          %s803 = scalar_lea.hbm %s10, %s802
          %s804 = sshll.u32 %s792, 4
          %s805 = int_to_ptr.vmem [resolvable:$true] %s804
          %810 = dma.vmem_to_hbm [thread:$0]  %s805, 256, %s803, %s789, 128, 128, 8
        $region84: #{tpu_custom_call.1} parent=59 // pred_fallthru
          _
      $region60: #{tpu_custom_call.1} parent=5 // pred_fallthru
        _
      %p811 = scmp.le.s32.totalorder 2, %s22
      // Predicated region
      $region85: #{tpu_custom_call.1} parent=5 // pred_check
        %p812 = pneg %p811
      $region86: #{tpu_custom_call.1} parent=5 // pred_check_branch
        %814 = sbr.rel (%p812) target = $region88
      $region87: #{tpu_custom_call.1} parent=5 // pred_region
        %s815 = ssub.s32 %s22, 2
        // Predicated region
        $region89: #{tpu_custom_call.1} parent=87 // pred_check
          %p816 = pneg %p280
        $region90: #{tpu_custom_call.1} parent=87 // pred_check_branch
          %818 = sbr.rel (%p816) target = $region92
        $region91: #{tpu_custom_call.1} parent=87 // pred_region
          %s819 = sand.u32 %s265, 1
          %s820 = scalar_lea.sflag [#allocation4], %s819
          %s821 = sand.u32 %s265, 1
          %s822 = smul.addr %s821, 16
          %s823 = scalar_lea.vmem [#allocation11], %s822
          %824 = dma.done %s820, 256
        $region92: #{tpu_custom_call.1} parent=87 // pred_fallthru
          _
      $region88: #{tpu_custom_call.1} parent=5 // pred_fallthru
        _
    $region6: #{tpu_custom_call.1} parent=1 // loop_footer
      %s26 = sadd.s32 1, %s22
    $region7: #{tpu_custom_call.1} parent=1 // loop_footer_branch
      %21 = sbr.rel target = $region3
    $region8: #{tpu_custom_call.1} parent=1 // loop_exit
      _
    %825 = vsyncpa [#allocation3], 1
    %s826 = scalar_lea.sflag [#allocation3], 1
    %827 = vsyncpa %s826, 1
    %828 = vsyncpa [#allocation6], 1
    %829 = vsyncpa [#allocation9], 1
    %830 = vsyncpa [#allocation4], 1
    %s831 = scalar_lea.sflag [#allocation4], 1
    %832 = vsyncpa %s831, 1

// kernel: tpu_custom_call.1
$region0: #{tpu_custom_call.1}
  #allocation0 [shape = 'u32[]', space=smem, size = 0x4, offset = 0x4, fixed_abs, tag = 'smem constant byte address 0x4 - core index']
  #allocation1 [shape = 'u32[144,128]{1,0:T(1,128)}', space=vmem, size = 0x12000, scoped, tag = 'internal scratch']
  %s0 = inlined_call_operand.hbm [shape: f32[16,128], index: 0, kind: input, shape index: {}]
  %s1 = inlined_call_operand.hbm [shape: f32[3,128], index: 1, kind: input, shape index: {}]
  %s2 = inlined_call_operand.vmem [shape: f32[1,128], index: 2, kind: input, shape index: {}]
  %s3 = inlined_call_operand.vmem [shape: f32[1,128], index: 3, kind: input, shape index: {}]
  %s4 = inlined_call_operand.hbm [shape: f32[128,128], index: 4, kind: input, shape index: {}]
  %s5 = inlined_call_operand.vmem [shape: f32[1,128], index: 5, kind: input, shape index: {}]
  %s6 = inlined_call_operand.hbm [shape: f32[128,128], index: 6, kind: input, shape index: {}]
  %s7 = inlined_call_operand.vmem [shape: f32[1,128], index: 7, kind: input, shape index: {}]
  %s8 = inlined_call_operand.hbm [shape: f32[128,128], index: 8, kind: input, shape index: {}]
  %s9 = inlined_call_operand.vmem [shape: f32[1,128], index: 9, kind: input, shape index: {}]
  %s10 = inlined_call_operand.hbm [shape: f32[3,16,128], index: 10, kind: output, shape index: {}]
  %s11 = sld [smem:[#allocation0]]
  $region93: #{tpu_custom_call.1} parent=0
    _
  %s13 = ssub.s32 1, %s11
  %s14 = scalar_select 0, %s13, %s11
  $region1: #{tpu_custom_call.1} parent=0
    #allocation2 [shape = 'u8[8192]{0}', space=vmem, size = 0x2000, scoped, tag = 'input window, operand 0, single buffered']
    #allocation3 [shape = 's32[2]{0}', space=sflag, size = 0x8, scoped, tag = 'scoped memory for tpu_custom_call.1']
    #allocation4 [shape = 's32[2]{0}', space=sflag, size = 0x8, scoped, tag = 'scoped memory for tpu_custom_call.1']
    #allocation5 [shape = 'u8[2048]{0}', space=vmem, size = 0x800, scoped, tag = 'input window, operand 1, single buffered']
    #allocation6 [shape = 's32[1]{0}', space=sflag, size = 0x4, scoped, tag = 'scoped memory for tpu_custom_call.1']
    #allocation7 [shape = 'u8[65536]{0}', space=vmem, size = 0x10000, scoped, tag = 'input window, operand 4, single buffered']
    #allocation8 [shape = 'u8[65536]{0}', space=vmem, size = 0x10000, scoped, tag = 'input window, operand 6, single buffered']
    #allocation9 [shape = 's32[1]{0}', space=sflag, size = 0x4, scoped, tag = 'scoped memory for tpu_custom_call.1']
    #allocation10 [shape = 'u8[65536]{0}', space=vmem, size = 0x10000, scoped, tag = 'input window, operand 8, single buffered']
    #allocation11 [shape = 'u8[16384]{0}', space=vmem, size = 0x4000, scoped, tag = 'output window, operand 0']
    %15 = vsyncpa [#allocation3], 0
    %16 = vsyncpa [#allocation6], 0
    %17 = vsyncpa [#allocation9], 0
    %18 = vsyncpa [#allocation4], 0
    %s19 = scalar_lea.sflag [#allocation4], 1
    %20 = vsyncpa %s19, 0
    loop: start=0, step=1, limit=5
    $region2: #{tpu_custom_call.1} parent=1 // loop_pre_header
      _
    $region3: #{tpu_custom_call.1} parent=1 // loop_header
      %s22 = sphi 0, %s26
      %p23 = scmp.ge.s32.totalorder %s22, 5
      %s29 = sphi 0, %s41
      %s30 = sphi 0, %s37
      %s31 = sphi 0, %s29
      %s32 = sphi 0, %s30
      %s33 = sphi 0, %s31
      %s34 = sphi 0, %s32
      %s44 = sphi 0, %s46
      %s47 = sphi 0, %s44
      %s48 = sphi 0, %s47
      %s64 = sphi 0, %s48
      %s68 = sphi 0, %s68
      %s70 = sphi 0, %s68
      %s71 = sphi 0, %s70
      %s85 = sphi 0, %s71
      %s89 = sphi 0, %s89
      %s91 = sphi 0, %s89
      %s92 = sphi 0, %s91
      %s106 = sphi 0, %s92
      %s110 = sphi 0, %s110
      %s112 = sphi 0, %s110
      %s113 = sphi 0, %s112
      %s127 = sphi 0, %s113
      %s131 = sphi 0, %s131
      %s133 = sphi 0, %s131
      %s134 = sphi 0, %s133
      %s148 = sphi 0, %s134
      %s152 = sphi 0, %s152
      %s154 = sphi 0, %s152
      %s155 = sphi 0, %s154
      %s169 = sphi 0, %s155
      %s173 = sphi 0, %s173
      %s175 = sphi 0, %s173
      %s176 = sphi 0, %s175
      %s190 = sphi 0, %s176
      %s194 = sphi 0, %s194
      %s196 = sphi 0, %s194
      %s197 = sphi 0, %s196
      %s211 = sphi 0, %s197
      %s215 = sphi 0, %s215
      %s217 = sphi 0, %s215
      %s218 = sphi 0, %s217
      %s232 = sphi 0, %s218
      %s236 = sphi 0, %s236
      %s238 = sphi 0, %s236
      %s239 = sphi 0, %s238
      %s253 = sphi 0, %s239
      %s261 = sphi 0, %s263
      %s264 = sphi 0, %s261
      %s265 = sphi 0, %s264
      %s281 = sphi 0, %s265
    $region4: #{tpu_custom_call.1} parent=1 // loop_header_branch
      %25 = sbr.rel (%p23) target = $region8
    $region5: #{tpu_custom_call.1} parent=1 // loop_body
      %s27 = ssub.s32 %s22, 1
      %s28 = ssub.s32 %s22, 2
      %s35 = sadd.s32 1, %s30
      %p36 = scmp.ge.s32.totalorder %s35, 3
      %s37 = scalar_select %p36, 0, %s35
      %s38 = sadd.s32 1, %s29
      %s39 = scalar_select %p36, %s38, %s29
      %p40 = scmp.ge.s32.totalorder %s39, 1
      %s41 = scalar_select %p40, 0, %s39
      %s42 = ssub.s32 %s29, %s41
      %p43 = scmp.eq.s32.totalorder %s42, 0
      %s45 = sadd.s32 %s44, 1
      %s46 = scalar_select %p43, %s44, %s45
      %p49 = pneg %p43
      %p50 = scmp.eq.s32.totalorder %s22, 2
      %p51 = por %p49, %p50
      %p52 = scmp.ne.s32.totalorder %s44, %s47
      %p53 = scmp.eq.s32.totalorder %s22, 0
      %p54 = por %p52, %p53
      %p55 = scmp.ne.s32.totalorder %s44, %s47
      %p56 = scmp.eq.s32.totalorder %s27, 2
      %p57 = por %p55, %p56
      %p58 = scmp.ne.s32.totalorder %s47, %s48
      %p59 = scmp.eq.s32.totalorder %s27, 0
      %p60 = por %p58, %p59
      %p61 = scmp.ne.s32.totalorder %s47, %s48
      %p62 = scmp.eq.s32.totalorder %s28, 2
      %p63 = por %p61, %p62
      %p65 = scmp.ne.s32.totalorder %s48, %s64
      %p66 = scmp.eq.s32.totalorder %s28, 0
      %p67 = por %p65, %p66
      %s69 = sadd.s32 %s68, 1
      %p72 = scmp.eq.s32.totalorder %s22, 2
      %p73 = scmp.ne.s32.totalorder %s68, %s70
      %p74 = scmp.eq.s32.totalorder %s22, 0
      %p75 = por %p73, %p74
      %p76 = scmp.ne.s32.totalorder %s68, %s70
      %p77 = scmp.eq.s32.totalorder %s27, 2
      %p78 = por %p76, %p77
      %p79 = scmp.ne.s32.totalorder %s70, %s71
      %p80 = scmp.eq.s32.totalorder %s27, 0
      %p81 = por %p79, %p80
      %p82 = scmp.ne.s32.totalorder %s70, %s71
      %p83 = scmp.eq.s32.totalorder %s28, 2
      %p84 = por %p82, %p83
      %p86 = scmp.ne.s32.totalorder %s71, %s85
      %p87 = scmp.eq.s32.totalorder %s28, 0
      %p88 = por %p86, %p87
      %s90 = sadd.s32 %s89, 1
      %p93 = scmp.eq.s32.totalorder %s22, 2
      %p94 = scmp.ne.s32.totalorder %s89, %s91
      %p95 = scmp.eq.s32.totalorder %s22, 0
      %p96 = por %p94, %p95
      %p97 = scmp.ne.s32.totalorder %s89, %s91
      %p98 = scmp.eq.s32.totalorder %s27, 2
      %p99 = por %p97, %p98
      %p100 = scmp.ne.s32.totalorder %s91, %s92
      %p101 = scmp.eq.s32.totalorder %s27, 0
      %p102 = por %p100, %p101
      %p103 = scmp.ne.s32.totalorder %s91, %s92
      %p104 = scmp.eq.s32.totalorder %s28, 2
      %p105 = por %p103, %p104
      %p107 = scmp.ne.s32.totalorder %s92, %s106
      %p108 = scmp.eq.s32.totalorder %s28, 0
      %p109 = por %p107, %p108
      %s111 = sadd.s32 %s110, 1
      %p114 = scmp.eq.s32.totalorder %s22, 2
      %p115 = scmp.ne.s32.totalorder %s110, %s112
      %p116 = scmp.eq.s32.totalorder %s22, 0
      %p117 = por %p115, %p116
      %p118 = scmp.ne.s32.totalorder %s110, %s112
      %p119 = scmp.eq.s32.totalorder %s27, 2
      %p120 = por %p118, %p119
      %p121 = scmp.ne.s32.totalorder %s112, %s113
      %p122 = scmp.eq.s32.totalorder %s27, 0
      %p123 = por %p121, %p122
      %p124 = scmp.ne.s32.totalorder %s112, %s113
      %p125 = scmp.eq.s32.totalorder %s28, 2
      %p126 = por %p124, %p125
      %p128 = scmp.ne.s32.totalorder %s113, %s127
      %p129 = scmp.eq.s32.totalorder %s28, 0
      %p130 = por %p128, %p129
      %s132 = sadd.s32 %s131, 1
      %p135 = scmp.eq.s32.totalorder %s22, 2
      %p136 = scmp.ne.s32.totalorder %s131, %s133
      %p137 = scmp.eq.s32.totalorder %s22, 0
      %p138 = por %p136, %p137
      %p139 = scmp.ne.s32.totalorder %s131, %s133
      %p140 = scmp.eq.s32.totalorder %s27, 2
      %p141 = por %p139, %p140
      %p142 = scmp.ne.s32.totalorder %s133, %s134
      %p143 = scmp.eq.s32.totalorder %s27, 0
      %p144 = por %p142, %p143
      %p145 = scmp.ne.s32.totalorder %s133, %s134
      %p146 = scmp.eq.s32.totalorder %s28, 2
      %p147 = por %p145, %p146
      %p149 = scmp.ne.s32.totalorder %s134, %s148
      %p150 = scmp.eq.s32.totalorder %s28, 0
      %p151 = por %p149, %p150
      %s153 = sadd.s32 %s152, 1
      %p156 = scmp.eq.s32.totalorder %s22, 2
      %p157 = scmp.ne.s32.totalorder %s152, %s154
      %p158 = scmp.eq.s32.totalorder %s22, 0
      %p159 = por %p157, %p158
      %p160 = scmp.ne.s32.totalorder %s152, %s154
      %p161 = scmp.eq.s32.totalorder %s27, 2
      %p162 = por %p160, %p161
      %p163 = scmp.ne.s32.totalorder %s154, %s155
      %p164 = scmp.eq.s32.totalorder %s27, 0
      %p165 = por %p163, %p164
      %p166 = scmp.ne.s32.totalorder %s154, %s155
      %p167 = scmp.eq.s32.totalorder %s28, 2
      %p168 = por %p166, %p167
      %p170 = scmp.ne.s32.totalorder %s155, %s169
      %p171 = scmp.eq.s32.totalorder %s28, 0
      %p172 = por %p170, %p171
      %s174 = sadd.s32 %s173, 1
      %p177 = scmp.eq.s32.totalorder %s22, 2
      %p178 = scmp.ne.s32.totalorder %s173, %s175
      %p179 = scmp.eq.s32.totalorder %s22, 0
      %p180 = por %p178, %p179
      %p181 = scmp.ne.s32.totalorder %s173, %s175
      %p182 = scmp.eq.s32.totalorder %s27, 2
      %p183 = por %p181, %p182
      %p184 = scmp.ne.s32.totalorder %s175, %s176
      %p185 = scmp.eq.s32.totalorder %s27, 0
      %p186 = por %p184, %p185
      %p187 = scmp.ne.s32.totalorder %s175, %s176
      %p188 = scmp.eq.s32.totalorder %s28, 2
      %p189 = por %p187, %p188
      %p191 = scmp.ne.s32.totalorder %s176, %s190
      %p192 = scmp.eq.s32.totalorder %s28, 0
      %p193 = por %p191, %p192
      %s195 = sadd.s32 %s194, 1
      %p198 = scmp.eq.s32.totalorder %s22, 2
      %p199 = scmp.ne.s32.totalorder %s194, %s196
      %p200 = scmp.eq.s32.totalorder %s22, 0
      %p201 = por %p199, %p200
      %p202 = scmp.ne.s32.totalorder %s194, %s196
      %p203 = scmp.eq.s32.totalorder %s27, 2
      %p204 = por %p202, %p203
      %p205 = scmp.ne.s32.totalorder %s196, %s197
      %p206 = scmp.eq.s32.totalorder %s27, 0
      %p207 = por %p205, %p206
      %p208 = scmp.ne.s32.totalorder %s196, %s197
      %p209 = scmp.eq.s32.totalorder %s28, 2
      %p210 = por %p208, %p209
      %p212 = scmp.ne.s32.totalorder %s197, %s211
      %p213 = scmp.eq.s32.totalorder %s28, 0
      %p214 = por %p212, %p213
      %s216 = sadd.s32 %s215, 1
      %p219 = scmp.eq.s32.totalorder %s22, 2
      %p220 = scmp.ne.s32.totalorder %s215, %s217
      %p221 = scmp.eq.s32.totalorder %s22, 0
      %p222 = por %p220, %p221
      %p223 = scmp.ne.s32.totalorder %s215, %s217
      %p224 = scmp.eq.s32.totalorder %s27, 2
      %p225 = por %p223, %p224
      %p226 = scmp.ne.s32.totalorder %s217, %s218
      %p227 = scmp.eq.s32.totalorder %s27, 0
      %p228 = por %p226, %p227
      %p229 = scmp.ne.s32.totalorder %s217, %s218
      %p230 = scmp.eq.s32.totalorder %s28, 2
      %p231 = por %p229, %p230
      %p233 = scmp.ne.s32.totalorder %s218, %s232
      %p234 = scmp.eq.s32.totalorder %s28, 0
      %p235 = por %p233, %p234
      %s237 = sadd.s32 %s236, 1
      %p240 = scmp.eq.s32.totalorder %s22, 2
      %p241 = scmp.ne.s32.totalorder %s236, %s238
      %p242 = scmp.eq.s32.totalorder %s22, 0
      %p243 = por %p241, %p242
      %p244 = scmp.ne.s32.totalorder %s236, %s238
      %p245 = scmp.eq.s32.totalorder %s27, 2
      %p246 = por %p244, %p245
      %p247 = scmp.ne.s32.totalorder %s238, %s239
      %p248 = scmp.eq.s32.totalorder %s27, 0
      %p249 = por %p247, %p248
      %p250 = scmp.ne.s32.totalorder %s238, %s239
      %p251 = scmp.eq.s32.totalorder %s28, 2
      %p252 = por %p250, %p251
      %p254 = scmp.ne.s32.totalorder %s239, %s253
      %p255 = scmp.eq.s32.totalorder %s28, 0
      %p256 = por %p254, %p255
      %s257 = ssub.s32 %s30, %s37
      %s258 = ssub.s32 %s29, %s41
      %s259 = sor.u32 %s257, %s258
      %p260 = scmp.eq.s32.totalorder %s259, 0
      %s262 = sadd.s32 %s261, 1
      %s263 = scalar_select %p260, %s261, %s262
      %p266 = pneg %p260
      %p267 = scmp.eq.s32.totalorder %s22, 2
      %p268 = por %p266, %p267
      %p269 = scmp.ne.s32.totalorder %s261, %s264
      %p270 = scmp.eq.s32.totalorder %s22, 0
      %p271 = por %p269, %p270
      %p272 = scmp.ne.s32.totalorder %s261, %s264
      %p273 = scmp.eq.s32.totalorder %s27, 2
      %p274 = por %p272, %p273
      %p275 = scmp.ne.s32.totalorder %s264, %s265
      %p276 = scmp.eq.s32.totalorder %s27, 0
      %p277 = por %p275, %p276
      %p278 = scmp.ne.s32.totalorder %s264, %s265
      %p279 = scmp.eq.s32.totalorder %s28, 2
      %p280 = por %p278, %p279
      %p282 = scmp.ne.s32.totalorder %s265, %s281
      %p283 = scmp.eq.s32.totalorder %s28, 0
      %p284 = por %p282, %p283
      %p285 = scmp.le.s32.totalorder 1, %s22
      %p286 = scmp.lt.s32.totalorder %s22, 4
      %p287 = pnand %p285, %p286
      %p288 = pneg %p287
      // Predicated region
      $region9: #{tpu_custom_call.1} parent=5 // pred_check
        _
      $region10: #{tpu_custom_call.1} parent=5 // pred_check_branch
        %290 = sbr.rel (%p287) target = $region12
      $region11: #{tpu_custom_call.1} parent=5 // pred_region
        %s291 = ssub.s32 %s22, 1
        // Predicated region
        $region13: #{tpu_custom_call.1} parent=11 // pred_check
          %p292 = pneg %p60
        $region14: #{tpu_custom_call.1} parent=11 // pred_check_branch
          %294 = sbr.rel (%p292) target = $region16
        $region15: #{tpu_custom_call.1} parent=11 // pred_region
          %s295 = smul.u32 2, %s31
          %s297 = ssub.s32 256, 256
          %298 = vsyncadd [#allocation3], %s297
          %s299 = smul.addr %s295, 128
          %s300 = scalar_lea.hbm %s0, %s299
          %s301 = sshll.u32 [#allocation2], 4
          %s302 = int_to_ptr.vmem [resolvable:$true] %s301
          %307 = dma.hbm_to_vmem [thread:$0]  %s300, 256, %s302, [#allocation3], 128, 128, 8
        $region16: #{tpu_custom_call.1} parent=11 // pred_fallthru
          _
        // Predicated region
        $region17: #{tpu_custom_call.1} parent=11 // pred_check
          %p308 = pneg %p81
        $region18: #{tpu_custom_call.1} parent=11 // pred_check_branch
          %310 = sbr.rel (%p308) target = $region20
        $region19: #{tpu_custom_call.1} parent=11 // pred_region
          %s312 = ssub.s32 64, 64
          %313 = vsyncadd [#allocation6], %s312
          %s315 = sshll.u32 [#allocation5], 4
          %s316 = int_to_ptr.vmem [resolvable:$true] %s315
          %318 = dma.hbm_to_vmem [thread:$0]  %s1, 64, %s316, [#allocation6]
        $region20: #{tpu_custom_call.1} parent=11 // pred_fallthru
          _
        // Predicated region
        $region21: #{tpu_custom_call.1} parent=11 // pred_check
          %p319 = pneg %p102
        $region22: #{tpu_custom_call.1} parent=11 // pred_check_branch
          %321 = sbr.rel (%p319) target = $region24
        $region23: #{tpu_custom_call.1} parent=11 // pred_region
          _
        $region24: #{tpu_custom_call.1} parent=11 // pred_fallthru
          _
        // Predicated region
        $region25: #{tpu_custom_call.1} parent=11 // pred_check
          %p322 = pneg %p123
        $region26: #{tpu_custom_call.1} parent=11 // pred_check_branch
          %324 = sbr.rel (%p322) target = $region28
        $region27: #{tpu_custom_call.1} parent=11 // pred_region
          _
        $region28: #{tpu_custom_call.1} parent=11 // pred_fallthru
          _
        // Predicated region
        $region29: #{tpu_custom_call.1} parent=11 // pred_check
          %p325 = pneg %p144
        $region30: #{tpu_custom_call.1} parent=11 // pred_check_branch
          %327 = sbr.rel (%p325) target = $region32
        $region31: #{tpu_custom_call.1} parent=11 // pred_region
          %s329 = ssub.s32 2048, 2048
          %330 = vsyncadd [#allocation6], %s329
          %s331 = sshll.u32 [#allocation7], 4
          %s332 = int_to_ptr.vmem [resolvable:$true] %s331
          %337 = dma.hbm_to_vmem [thread:$0]  %s4, 2048, %s332, [#allocation6], 128, 128, 8
        $region32: #{tpu_custom_call.1} parent=11 // pred_fallthru
          _
        // Predicated region
        $region33: #{tpu_custom_call.1} parent=11 // pred_check
          %p338 = pneg %p165
        $region34: #{tpu_custom_call.1} parent=11 // pred_check_branch
          %340 = sbr.rel (%p338) target = $region36
        $region35: #{tpu_custom_call.1} parent=11 // pred_region
          _
        $region36: #{tpu_custom_call.1} parent=11 // pred_fallthru
          _
        // Predicated region
        $region37: #{tpu_custom_call.1} parent=11 // pred_check
          %p341 = pneg %p186
        $region38: #{tpu_custom_call.1} parent=11 // pred_check_branch
          %343 = sbr.rel (%p341) target = $region40
        $region39: #{tpu_custom_call.1} parent=11 // pred_region
          %s345 = ssub.s32 2048, 2048
          %346 = vsyncadd [#allocation9], %s345
          %s347 = sshll.u32 [#allocation8], 4
          %s348 = int_to_ptr.vmem [resolvable:$true] %s347
          %353 = dma.hbm_to_vmem [thread:$0]  %s6, 2048, %s348, [#allocation9], 128, 128, 8
        $region40: #{tpu_custom_call.1} parent=11 // pred_fallthru
          _
        // Predicated region
        $region41: #{tpu_custom_call.1} parent=11 // pred_check
          %p354 = pneg %p207
        $region42: #{tpu_custom_call.1} parent=11 // pred_check_branch
          %356 = sbr.rel (%p354) target = $region44
        $region43: #{tpu_custom_call.1} parent=11 // pred_region
          _
        $region44: #{tpu_custom_call.1} parent=11 // pred_fallthru
          _
        // Predicated region
        $region45: #{tpu_custom_call.1} parent=11 // pred_check
          %p357 = pneg %p228
        $region46: #{tpu_custom_call.1} parent=11 // pred_check_branch
          %359 = sbr.rel (%p357) target = $region48
        $region47: #{tpu_custom_call.1} parent=11 // pred_region
          %s361 = ssub.s32 2048, 2048
          %362 = vsyncadd [#allocation9], %s361
          %s363 = sshll.u32 [#allocation10], 4
          %s364 = int_to_ptr.vmem [resolvable:$true] %s363
          %369 = dma.hbm_to_vmem [thread:$0]  %s8, 2048, %s364, [#allocation9], 128, 128, 8
        $region48: #{tpu_custom_call.1} parent=11 // pred_fallthru
          _
        // Predicated region
        $region49: #{tpu_custom_call.1} parent=11 // pred_check
          %p370 = pneg %p249
        $region50: #{tpu_custom_call.1} parent=11 // pred_check_branch
          %372 = sbr.rel (%p370) target = $region52
        $region51: #{tpu_custom_call.1} parent=11 // pred_region
          _
        $region52: #{tpu_custom_call.1} parent=11 // pred_fallthru
          _
      $region12: #{tpu_custom_call.1} parent=5 // pred_fallthru
        _
      %p373 = scmp.lt.s32.totalorder %s22, 3
      // Predicated region
      $region53: #{tpu_custom_call.1} parent=5 // pred_check
        %p374 = pneg %p373
      $region54: #{tpu_custom_call.1} parent=5 // pred_check_branch
        %376 = sbr.rel (%p374) target = $region56
      $region55: #{tpu_custom_call.1} parent=5 // pred_region
        _
      $region56: #{tpu_custom_call.1} parent=5 // pred_fallthru
        _
      %p377 = scmp.le.s32.totalorder 1, %s22
      %p378 = scmp.lt.s32.totalorder %s22, 4
      %p379 = pnand %p377, %p378
      %p380 = pneg %p379
      // Predicated region
      $region57: #{tpu_custom_call.1} parent=5 // pred_check
        _
      $region58: #{tpu_custom_call.1} parent=5 // pred_check_branch
        %382 = sbr.rel (%p379) target = $region60
      $region59: #{tpu_custom_call.1} parent=5 // pred_region
        %s383 = ssub.s32 %s22, 1
        // Predicated region
        $region61: #{tpu_custom_call.1} parent=59 // pred_check
          %p384 = pneg %p60
        $region62: #{tpu_custom_call.1} parent=59 // pred_check_branch
          %386 = sbr.rel (%p384) target = $region64
        $region63: #{tpu_custom_call.1} parent=59 // pred_region
          %387 = dma.done [#allocation3], 256
        $region64: #{tpu_custom_call.1} parent=59 // pred_fallthru
          _
        // Predicated region
        $region65: #{tpu_custom_call.1} parent=59 // pred_check
          %p388 = pneg %p81
        $region66: #{tpu_custom_call.1} parent=59 // pred_check_branch
          %390 = sbr.rel (%p388) target = $region68
        $region67: #{tpu_custom_call.1} parent=59 // pred_region
          %391 = dma.done [#allocation6], 64
        $region68: #{tpu_custom_call.1} parent=59 // pred_fallthru
          _
        // Predicated region
        $region69: #{tpu_custom_call.1} parent=59 // pred_check
          %p392 = pneg %p144
        $region70: #{tpu_custom_call.1} parent=59 // pred_check_branch
          %394 = sbr.rel (%p392) target = $region72
        $region71: #{tpu_custom_call.1} parent=59 // pred_region
          %395 = dma.done [#allocation6], 2048
        $region72: #{tpu_custom_call.1} parent=59 // pred_fallthru
          _
        // Predicated region
        $region73: #{tpu_custom_call.1} parent=59 // pred_check
          %p396 = pneg %p186
        $region74: #{tpu_custom_call.1} parent=59 // pred_check_branch
          %398 = sbr.rel (%p396) target = $region76
        $region75: #{tpu_custom_call.1} parent=59 // pred_region
          %399 = dma.done [#allocation9], 2048
        $region76: #{tpu_custom_call.1} parent=59 // pred_fallthru
          _
        // Predicated region
        $region77: #{tpu_custom_call.1} parent=59 // pred_check
          %p400 = pneg %p228
        $region78: #{tpu_custom_call.1} parent=59 // pred_check_branch
          %402 = sbr.rel (%p400) target = $region80
        $region79: #{tpu_custom_call.1} parent=59 // pred_region
          %403 = dma.done [#allocation9], 2048
        $region80: #{tpu_custom_call.1} parent=59 // pred_fallthru
          _
        %p404 = pneg %p60
        %p405 = pneg %p57
        %p406 = pneg %p81
        %p407 = pneg %p78
        %p408 = pneg %p102
        %p409 = pneg %p99
        %p410 = pneg %p123
        %p411 = pneg %p120
        %p412 = pneg %p144
        %p413 = pneg %p141
        %p414 = pneg %p165
        %p415 = pneg %p162
        %p416 = pneg %p186
        %p417 = pneg %p183
        %p418 = pneg %p207
        %p419 = pneg %p204
        %p420 = pneg %p228
        %p421 = pneg %p225
        %p422 = pneg %p249
        %p423 = pneg %p246
        %p424 = pneg %p277
        %p425 = pneg %p274
        %s426 = sand.u32 %s264, 1
        %s427 = scalar_lea.sflag [#allocation4], %s426
        %s428 = sand.u32 %s264, 1
        %s429 = smul.addr %s428, 16
        %s430 = scalar_lea.vmem [#allocation11], %s429
        %s431 = smul.u32 2, %s31
        %s432 = smul.u32 2, %s31
        %v433 = vld [vmem:[#allocation2] sm:$0xff]
        %v434 = vld [vmem:[#allocation2 + $0x8] sm:$0xff]
        %s435 = scalar_lea.vmem [#allocation5], %s32
        %v436 = vld [vmem:[%s435] sm:$0x1]
        %v437 = vlaneseq
        %v438 = vshrl.u32 %v437, 7
        %v439 = vsub.s32 0, %v438
        %v440 = vrot.slane %v436, %v439
        %v441 = vadd.f32 %v433, %v440
        %v442 = vadd.f32 %v434, %v440
        %443 = vadd.xlane.f32.xlu0 %v441
        %v444 = vpop.xlane.xlu0 %443
        %445 = vadd.xlane.f32.xlu0 %v442
        %v446 = vpop.xlane.xlu0 %445
        %v447 = vmul.f32 %v444, 0.03125
        %v448 = vmul.f32 %v446, 0.03125
        %v449 = vsub.f32 %v441, %v447
        %v450 = vsub.f32 %v442, %v448
        %v451 = vlaneseq
        %v452 = vand.u32 %v451, 127
        %vm453 = vcmp.lt.s32.totalorder %v452, 32
        %v454 = vsel %vm453, %v449, 0.0
        %v455 = vsel %vm453, %v450, 0.0
        %v456 = vmul.f32 %v454, %v454
        %v457 = vmul.f32 %v455, %v455
        %458 = vadd.xlane.f32.xlu0 %v456
        %v459 = vpop.xlane.xlu0 %458
        %460 = vadd.xlane.f32.xlu0 %v457
        %v461 = vpop.xlane.xlu0 %460
        %v462 = vmul.f32 %v459, 0.03125
        %v463 = vmul.f32 %v461, 0.03125
        %v464 = vadd.f32 %v462, 1e-06
        %v465 = vadd.f32 %v463, 1e-06
        %v466 = vrsqrt.pop %v464
        %v467 = vrsqrt.pop %v465
        %v468 = vmul.f32 %v454, %v466
        %v469 = vmul.f32 %v455, %v467
        %v470 = vld [vmem:[%s2] sm:$0x1]
        %v472 = vlaneseq
        %v473 = vshrl.u32 %v472, 7
        %v474 = vsub.s32 0, %v473
        %v475 = vrot.slane %v470, %v474
        %v477 = vmul.f32 %v468, %v475
        %v478 = vmul.f32 %v469, %v475
        %v479 = vld [vmem:[%s3] sm:$0x1]
        %v481 = vlaneseq
        %v482 = vshrl.u32 %v481, 7
        %v483 = vsub.s32 0, %v482
        %v484 = vrot.slane %v479, %v483
        %v486 = vadd.f32 %v477, %v484
        %v487 = vadd.f32 %v478, %v484
        %v488 = vld [vmem:[#allocation7] sm:$0xff]
        %v489 = vld [vmem:[#allocation7 + $0x8] sm:$0xff]
        %v490 = vld [vmem:[#allocation7 + $0x10] sm:$0xff]
        %v491 = vld [vmem:[#allocation7 + $0x18] sm:$0xff]
        %v492 = vld [vmem:[#allocation7 + $0x20] sm:$0xff]
        %v493 = vld [vmem:[#allocation7 + $0x28] sm:$0xff]
        %v494 = vld [vmem:[#allocation7 + $0x30] sm:$0xff]
        %v495 = vld [vmem:[#allocation7 + $0x38] sm:$0xff]
        %v496 = vld [vmem:[#allocation7 + $0x40] sm:$0xff]
        %v497 = vld [vmem:[#allocation7 + $0x48] sm:$0xff]
        %v498 = vld [vmem:[#allocation7 + $0x50] sm:$0xff]
        %v499 = vld [vmem:[#allocation7 + $0x58] sm:$0xff]
        %v500 = vld [vmem:[#allocation7 + $0x60] sm:$0xff]
        %v501 = vld [vmem:[#allocation7 + $0x68] sm:$0xff]
        %v502 = vld [vmem:[#allocation7 + $0x70] sm:$0xff]
        %v503 = vld [vmem:[#allocation7 + $0x78] sm:$0xff]
        %v504 = vld [vmem:[%s5] sm:$0x1]
        %v506 = vlaneseq
        %v507 = vshrl.u32 %v506, 7
        %v508 = vsub.s32 0, %v507
        %v509 = vrot.slane %v504, %v508
        %511 = vmatprep.subr.mxu0 0.0
        %512 = vmatpush1.msra.mxu0 %v488
        %513 = vmatprep.subr.mxu0 0.0
        %514 = vmatpush1.msra.mxu0 %v489
        %515 = vmatprep.subr.mxu0 0.0
        %516 = vmatpush1.msra.mxu0 %v490
        %517 = vmatprep.subr.mxu0 0.0
        %518 = vmatpush1.msra.mxu0 %v491
        %519 = vmatprep.subr.mxu0 0.0
        %520 = vmatpush1.msra.mxu0 %v492
        %521 = vmatprep.subr.mxu0 0.0
        %522 = vmatpush1.msra.mxu0 %v493
        %523 = vmatprep.subr.mxu0 0.0
        %524 = vmatpush1.msra.mxu0 %v494
        %525 = vmatprep.subr.mxu0 0.0
        %526 = vmatpush1.msra.mxu0 %v495
        %527 = vmatprep.subr.mxu0 0.0
        %528 = vmatpush1.msra.mxu0 %v496
        %529 = vmatprep.subr.mxu0 0.0
        %530 = vmatpush1.msra.mxu0 %v497
        %531 = vmatprep.subr.mxu0 0.0
        %532 = vmatpush1.msra.mxu0 %v498
        %533 = vmatprep.subr.mxu0 0.0
        %534 = vmatpush1.msra.mxu0 %v499
        %535 = vmatprep.subr.mxu0 0.0
        %536 = vmatpush1.msra.mxu0 %v500
        %537 = vmatprep.subr.mxu0 0.0
        %538 = vmatpush1.msra.mxu0 %v501
        %539 = vmatprep.subr.mxu0 0.0
        %540 = vmatpush1.msra.mxu0 %v502
        %541 = vmatprep.subr.mxu0 0.0
        %542 = vmatpush1.msra.mxu0 %v503
        %543 = vmatprep.subr.mxu0 0.0
        %544 = vmatpush1.msra.mxu0 0.0
        %545 = vmatprep.subr.mxu0 0.0
        %546 = vmatpush1.msra.mxu0 0.0
        %547 = vmatprep.subr.mxu0 0.0
        %548 = vmatpush1.msra.mxu0 0.0
        %549 = vmatprep.subr.mxu0 0.0
        %550 = vmatpush1.msra.mxu0 0.0
        %551 = vmatprep.subr.mxu0 0.0
        %552 = vmatpush1.msra.mxu0 0.0
        %553 = vmatprep.subr.mxu0 0.0
        %554 = vmatpush1.msra.mxu0 0.0
        %555 = vmatprep.subr.mxu0 0.0
        %556 = vmatpush1.msra.mxu0 0.0
        %557 = vmatprep.subr.mxu0 0.0
        %558 = vmatpush1.msra.mxu0 0.0
        %559 = vmatprep.subr.mxu0 0.0
        %560 = vmatpush1.msra.mxu0 0.0
        %561 = vmatprep.subr.mxu0 0.0
        %562 = vmatpush1.msra.mxu0 0.0
        %563 = vmatprep.subr.mxu0 0.0
        %564 = vmatpush1.msra.mxu0 0.0
        %565 = vmatprep.subr.mxu0 0.0
        %566 = vmatpush1.msra.mxu0 0.0
        %567 = vmatprep.subr.mxu0 0.0
        %568 = vmatpush1.msra.mxu0 0.0
        %569 = vmatprep.subr.mxu0 0.0
        %570 = vmatpush1.msra.mxu0 0.0
        %571 = vmatprep.subr.mxu0 0.0
        %572 = vmatpush1.msra.mxu0 0.0
        %573 = vmatprep.subr.mxu0 0.0
        %574 = vmatpush1.msra.mxu0 0.0
        %575 = vmatprep.mubr.f32.mxu0 0.0
        %576 = vmatmul.mubr.f32.gmra.mrb[0].mxu0 %v486
        %v577 = vpop.f32.mrb[0].mxu0
        %v578 = vadd.f32 %v509, %v577
        %v579 = vpop.f32.mrb[0].mxu0
        %580 = vmatprep.mubr.f32.mxu0 0.0
        %581 = vmatmul.mubr.f32.gmra.mrb[0].mxu0 %v487
        %v582 = vpop.f32.mrb[0].mxu0
        %v583 = vadd.f32 %v509, %v582
        %v584 = vpop.f32.mrb[0].mxu0
        %585 = vdwg.mxu0
        %v586 = vmax.f32 %v578, 0.0
        %v587 = vmax.f32 %v583, 0.0
        %v588 = vld [vmem:[#allocation8] sm:$0xff]
        %v589 = vld [vmem:[#allocation8 + $0x8] sm:$0xff]
        %v590 = vld [vmem:[#allocation8 + $0x10] sm:$0xff]
        %v591 = vld [vmem:[#allocation8 + $0x18] sm:$0xff]
        %v592 = vld [vmem:[#allocation8 + $0x20] sm:$0xff]
        %v593 = vld [vmem:[#allocation8 + $0x28] sm:$0xff]
        %v594 = vld [vmem:[#allocation8 + $0x30] sm:$0xff]
        %v595 = vld [vmem:[#allocation8 + $0x38] sm:$0xff]
        %v596 = vld [vmem:[#allocation8 + $0x40] sm:$0xff]
        %v597 = vld [vmem:[#allocation8 + $0x48] sm:$0xff]
        %v598 = vld [vmem:[#allocation8 + $0x50] sm:$0xff]
        %v599 = vld [vmem:[#allocation8 + $0x58] sm:$0xff]
        %v600 = vld [vmem:[#allocation8 + $0x60] sm:$0xff]
        %v601 = vld [vmem:[#allocation8 + $0x68] sm:$0xff]
        %v602 = vld [vmem:[#allocation8 + $0x70] sm:$0xff]
        %v603 = vld [vmem:[#allocation8 + $0x78] sm:$0xff]
        %v604 = vld [vmem:[%s7] sm:$0x1]
        %v606 = vlaneseq
        %v607 = vshrl.u32 %v606, 7
        %v608 = vsub.s32 0, %v607
        %v609 = vrot.slane %v604, %v608
        %611 = vmatprep.subr.mxu0 0.0
        %612 = vmatpush1.msra.mxu0 %v588
        %613 = vmatprep.subr.mxu0 0.0
        %614 = vmatpush1.msra.mxu0 %v589
        %615 = vmatprep.subr.mxu0 0.0
        %616 = vmatpush1.msra.mxu0 %v590
        %617 = vmatprep.subr.mxu0 0.0
        %618 = vmatpush1.msra.mxu0 %v591
        %619 = vmatprep.subr.mxu0 0.0
        %620 = vmatpush1.msra.mxu0 %v592
        %621 = vmatprep.subr.mxu0 0.0
        %622 = vmatpush1.msra.mxu0 %v593
        %623 = vmatprep.subr.mxu0 0.0
        %624 = vmatpush1.msra.mxu0 %v594
        %625 = vmatprep.subr.mxu0 0.0
        %626 = vmatpush1.msra.mxu0 %v595
        %627 = vmatprep.subr.mxu0 0.0
        %628 = vmatpush1.msra.mxu0 %v596
        %629 = vmatprep.subr.mxu0 0.0
        %630 = vmatpush1.msra.mxu0 %v597
        %631 = vmatprep.subr.mxu0 0.0
        %632 = vmatpush1.msra.mxu0 %v598
        %633 = vmatprep.subr.mxu0 0.0
        %634 = vmatpush1.msra.mxu0 %v599
        %635 = vmatprep.subr.mxu0 0.0
        %636 = vmatpush1.msra.mxu0 %v600
        %637 = vmatprep.subr.mxu0 0.0
        %638 = vmatpush1.msra.mxu0 %v601
        %639 = vmatprep.subr.mxu0 0.0
        %640 = vmatpush1.msra.mxu0 %v602
        %641 = vmatprep.subr.mxu0 0.0
        %642 = vmatpush1.msra.mxu0 %v603
        %643 = vmatprep.subr.mxu0 0.0
        %644 = vmatpush1.msra.mxu0 0.0
        %645 = vmatprep.subr.mxu0 0.0
        %646 = vmatpush1.msra.mxu0 0.0
        %647 = vmatprep.subr.mxu0 0.0
        %648 = vmatpush1.msra.mxu0 0.0
        %649 = vmatprep.subr.mxu0 0.0
        %650 = vmatpush1.msra.mxu0 0.0
        %651 = vmatprep.subr.mxu0 0.0
        %652 = vmatpush1.msra.mxu0 0.0
        %653 = vmatprep.subr.mxu0 0.0
        %654 = vmatpush1.msra.mxu0 0.0
        %655 = vmatprep.subr.mxu0 0.0
        %656 = vmatpush1.msra.mxu0 0.0
        %657 = vmatprep.subr.mxu0 0.0
        %658 = vmatpush1.msra.mxu0 0.0
        %659 = vmatprep.subr.mxu0 0.0
        %660 = vmatpush1.msra.mxu0 0.0
        %661 = vmatprep.subr.mxu0 0.0
        %662 = vmatpush1.msra.mxu0 0.0
        %663 = vmatprep.subr.mxu0 0.0
        %664 = vmatpush1.msra.mxu0 0.0
        %665 = vmatprep.subr.mxu0 0.0
        %666 = vmatpush1.msra.mxu0 0.0
        %667 = vmatprep.subr.mxu0 0.0
        %668 = vmatpush1.msra.mxu0 0.0
        %669 = vmatprep.subr.mxu0 0.0
        %670 = vmatpush1.msra.mxu0 0.0
        %671 = vmatprep.subr.mxu0 0.0
        %672 = vmatpush1.msra.mxu0 0.0
        %673 = vmatprep.subr.mxu0 0.0
        %674 = vmatpush1.msra.mxu0 0.0
        %675 = vmatprep.mubr.f32.mxu0 0.0
        %676 = vmatmul.mubr.f32.gmra.mrb[0].mxu0 %v586
        %v677 = vpop.f32.mrb[0].mxu0
        %v678 = vadd.f32 %v609, %v677
        %v679 = vpop.f32.mrb[0].mxu0
        %680 = vmatprep.mubr.f32.mxu0 0.0
        %681 = vmatmul.mubr.f32.gmra.mrb[0].mxu0 %v587
        %v682 = vpop.f32.mrb[0].mxu0
        %v683 = vadd.f32 %v609, %v682
        %v684 = vpop.f32.mrb[0].mxu0
        %685 = vdwg.mxu0
        %v686 = vmax.f32 %v678, 0.0
        %v687 = vmax.f32 %v683, 0.0
        %v688 = vld [vmem:[#allocation10] sm:$0xff]
        %v689 = vld [vmem:[#allocation10 + $0x8] sm:$0xff]
        %v690 = vld [vmem:[#allocation10 + $0x10] sm:$0xff]
        %v691 = vld [vmem:[#allocation10 + $0x18] sm:$0xff]
        %v692 = vld [vmem:[#allocation10 + $0x20] sm:$0xff]
        %v693 = vld [vmem:[#allocation10 + $0x28] sm:$0xff]
        %v694 = vld [vmem:[#allocation10 + $0x30] sm:$0xff]
        %v695 = vld [vmem:[#allocation10 + $0x38] sm:$0xff]
        %v696 = vld [vmem:[#allocation10 + $0x40] sm:$0xff]
        %v697 = vld [vmem:[#allocation10 + $0x48] sm:$0xff]
        %v698 = vld [vmem:[#allocation10 + $0x50] sm:$0xff]
        %v699 = vld [vmem:[#allocation10 + $0x58] sm:$0xff]
        %v700 = vld [vmem:[#allocation10 + $0x60] sm:$0xff]
        %v701 = vld [vmem:[#allocation10 + $0x68] sm:$0xff]
        %v702 = vld [vmem:[#allocation10 + $0x70] sm:$0xff]
        %v703 = vld [vmem:[#allocation10 + $0x78] sm:$0xff]
        %v704 = vld [vmem:[%s9] sm:$0x1]
        %v706 = vlaneseq
        %v707 = vshrl.u32 %v706, 7
        %v708 = vsub.s32 0, %v707
        %v709 = vrot.slane %v704, %v708
        %711 = vmatprep.subr.mxu0 0.0
        %712 = vmatpush1.msra.mxu0 %v688
        %713 = vmatprep.subr.mxu0 0.0
        %714 = vmatpush1.msra.mxu0 %v689
        %715 = vmatprep.subr.mxu0 0.0
        %716 = vmatpush1.msra.mxu0 %v690
        %717 = vmatprep.subr.mxu0 0.0
        %718 = vmatpush1.msra.mxu0 %v691
        %719 = vmatprep.subr.mxu0 0.0
        %720 = vmatpush1.msra.mxu0 %v692
        %721 = vmatprep.subr.mxu0 0.0
        %722 = vmatpush1.msra.mxu0 %v693
        %723 = vmatprep.subr.mxu0 0.0
        %724 = vmatpush1.msra.mxu0 %v694
        %725 = vmatprep.subr.mxu0 0.0
        %726 = vmatpush1.msra.mxu0 %v695
        %727 = vmatprep.subr.mxu0 0.0
        %728 = vmatpush1.msra.mxu0 %v696
        %729 = vmatprep.subr.mxu0 0.0
        %730 = vmatpush1.msra.mxu0 %v697
        %731 = vmatprep.subr.mxu0 0.0
        %732 = vmatpush1.msra.mxu0 %v698
        %733 = vmatprep.subr.mxu0 0.0
        %734 = vmatpush1.msra.mxu0 %v699
        %735 = vmatprep.subr.mxu0 0.0
        %736 = vmatpush1.msra.mxu0 %v700
        %737 = vmatprep.subr.mxu0 0.0
        %738 = vmatpush1.msra.mxu0 %v701
        %739 = vmatprep.subr.mxu0 0.0
        %740 = vmatpush1.msra.mxu0 %v702
        %741 = vmatprep.subr.mxu0 0.0
        %742 = vmatpush1.msra.mxu0 %v703
        %743 = vmatprep.subr.mxu0 0.0
        %744 = vmatpush1.msra.mxu0 0.0
        %745 = vmatprep.subr.mxu0 0.0
        %746 = vmatpush1.msra.mxu0 0.0
        %747 = vmatprep.subr.mxu0 0.0
        %748 = vmatpush1.msra.mxu0 0.0
        %749 = vmatprep.subr.mxu0 0.0
        %750 = vmatpush1.msra.mxu0 0.0
        %751 = vmatprep.subr.mxu0 0.0
        %752 = vmatpush1.msra.mxu0 0.0
        %753 = vmatprep.subr.mxu0 0.0
        %754 = vmatpush1.msra.mxu0 0.0
        %755 = vmatprep.subr.mxu0 0.0
        %756 = vmatpush1.msra.mxu0 0.0
        %757 = vmatprep.subr.mxu0 0.0
        %758 = vmatpush1.msra.mxu0 0.0
        %759 = vmatprep.subr.mxu0 0.0
        %760 = vmatpush1.msra.mxu0 0.0
        %761 = vmatprep.subr.mxu0 0.0
        %762 = vmatpush1.msra.mxu0 0.0
        %763 = vmatprep.subr.mxu0 0.0
        %764 = vmatpush1.msra.mxu0 0.0
        %765 = vmatprep.subr.mxu0 0.0
        %766 = vmatpush1.msra.mxu0 0.0
        %767 = vmatprep.subr.mxu0 0.0
        %768 = vmatpush1.msra.mxu0 0.0
        %769 = vmatprep.subr.mxu0 0.0
        %770 = vmatpush1.msra.mxu0 0.0
        %771 = vmatprep.subr.mxu0 0.0
        %772 = vmatpush1.msra.mxu0 0.0
        %773 = vmatprep.subr.mxu0 0.0
        %774 = vmatpush1.msra.mxu0 0.0
        %775 = vmatprep.mubr.f32.mxu0 0.0
        %776 = vmatmul.mubr.f32.gmra.mrb[0].mxu0 %v686
        %v777 = vpop.f32.mrb[0].mxu0
        %v778 = vadd.f32 %v709, %v777
        %v779 = vpop.f32.mrb[0].mxu0
        %780 = vmatprep.mubr.f32.mxu0 0.0
        %781 = vmatmul.mubr.f32.gmra.mrb[0].mxu0 %v687
        %v782 = vpop.f32.mrb[0].mxu0
        %v783 = vadd.f32 %v709, %v782
        %v784 = vpop.f32.mrb[0].mxu0
        %785 = vdwg.mxu0
        %786 = vst [vmem:[%s430] sm:$0xff] %v778
        %787 = vst [vmem:[%s430 + $0x8] sm:$0xff] %v783
        %s788 = sand.u32 %s264, 1
        %s789 = scalar_lea.sflag [#allocation4], %s788
        %s790 = sand.u32 %s264, 1
        %s791 = smul.addr %s790, 16
        %s792 = scalar_lea.vmem [#allocation11], %s791
        // Predicated region
        $region81: #{tpu_custom_call.1} parent=59 // pred_check
          %p793 = pneg %p274
        $region82: #{tpu_custom_call.1} parent=59 // pred_check_branch
          %795 = sbr.rel (%p793) target = $region84
        $region83: #{tpu_custom_call.1} parent=59 // pred_region
          %s796 = smul.u32 2, %s31
          %s798 = ssub.s32 256, 256
          %799 = vsyncadd %s789, %s798
          %s800 = smul.addr %s32, 2
          %s801 = sadd.s32 %s796, %s800
          %s802 = smul.addr %s801, 128
          %s803 = scalar_lea.hbm %s10, %s802
          %s804 = sshll.u32 %s792, 4
          %s805 = int_to_ptr.vmem [resolvable:$true] %s804
          %810 = dma.vmem_to_hbm [thread:$0]  %s805, 256, %s803, %s789, 128, 128, 8
        $region84: #{tpu_custom_call.1} parent=59 // pred_fallthru
          _
      $region60: #{tpu_custom_call.1} parent=5 // pred_fallthru
        _
      %p811 = scmp.le.s32.totalorder 2, %s22
      // Predicated region
      $region85: #{tpu_custom_call.1} parent=5 // pred_check
        %p812 = pneg %p811
      $region86: #{tpu_custom_call.1} parent=5 // pred_check_branch
        %814 = sbr.rel (%p812) target = $region88
      $region87: #{tpu_custom_call.1} parent=5 // pred_region
        %s815 = ssub.s32 %s22, 2
        // Predicated region
        $region89: #{tpu_custom_call.1} parent=87 // pred_check
          %p816 = pneg %p280
        $region90: #{tpu_custom_call.1} parent=87 // pred_check_branch
          %818 = sbr.rel (%p816) target = $region92
        $region91: #{tpu_custom_call.1} parent=87 // pred_region
          %s819 = sand.u32 %s265, 1
          %s820 = scalar_lea.sflag [#allocation4], %s819
          %s821 = sand.u32 %s265, 1
          %s822 = smul.addr %s821, 16
          %s823 = scalar_lea.vmem [#allocation11], %s822
          %824 = dma.done %s820, 256
        $region92: #{tpu_custom_call.1} parent=87 // pred_fallthru
          _
      $region88: #{tpu_custom_call.1} parent=5 // pred_fallthru
        _
    $region6: #{tpu_custom_call.1} parent=1 // loop_footer
      %s26 = sadd.s32 1, %s22
    $region7: #{tpu_custom_call.1} parent=1 // loop_footer_branch
      %21 = sbr.rel target = $region3
    $region8: #{tpu_custom_call.1} parent=1 // loop_exit
      _
    %825 = vsyncpa [#allocation3], 1
    %s826 = scalar_lea.sflag [#allocation3], 1
    %827 = vsyncpa %s826, 1
    %828 = vsyncpa [#allocation6], 1
    %829 = vsyncpa [#allocation9], 1
    %830 = vsyncpa [#allocation4], 1
    %s831 = scalar_lea.sflag [#allocation4], 1
    %832 = vsyncpa %s831, 1

</llo_original>
